<compile_context>
chip_gen: v6e
topology: v6e:2x2x1
jax: 0.10.0
libtpu: 0.0.40
codegen_flags: <defaults>
</compile_context>

<pallas_src>
import math
import random

import numpy as np
import jax
import jax.numpy as jnp
from jax.experimental import pallas as pl
from jax.experimental.pallas import tpu as pltpu

C = 3
BURN_LEVELS = (0.25, 0.5, 0.75, 1.0)
# EnhancedPizzaBurningEffect._create_burn_color (color_variation=True),
# evaluated at the four static burn levels used in the forward pass.
BURN_COLORS = np.array(
    [
        [0.65, 0.40, 0.25],  # level 0.25  (< 0.5)
        [0.35, 0.20, 0.15],  # level 0.50  (< 0.8)
        [0.35, 0.20, 0.15],  # level 0.75  (< 0.8)
        [0.15, 0.10, 0.10],  # level 1.00
    ],
    dtype=np.float32,
)
WARMTH_CHAN = (1.0, 0.3, -0.2)  # per-channel warmth multipliers (r, g, b)

# seg_params columns (float32, one row per pizza segment)
(P_START, P_END, P_RADIUS, P_BURNFLAG, P_THRESH,
 P_BINT, P_TEXFLAG, P_WARMFLAG, P_WARMTH) = range(9)
NPARAM = 16  # padded row width


def pizza_segment_kernel(burn2d_ref, bint_ref, texg_ref, wf_ref, img_ref, out_ref):
    """Single elementwise pass: burn-level blend, char, texture, warmth, clips."""
    burn2d = burn2d_ref[...]

    # One-hot level masks (channel-invariant); float form so the blend factor
    # and color maps are mul-add accumulations instead of select chains.
    lm0 = ((burn2d > 0.25 * 0.8) & (burn2d <= 0.25)).astype(jnp.float32)
    lm1 = ((burn2d > 0.50 * 0.8) & (burn2d <= 0.50)).astype(jnp.float32)
    lm2 = ((burn2d > 0.75 * 0.8) & (burn2d <= 0.75)).astype(jnp.float32)
    lm3 = ((burn2d > 0.80) & (burn2d <= 1.00)).astype(jnp.float32)
    lm12 = lm1 + lm2                                  # BURN_COLORS[1] == [2]

    bf_map = 0.25 * lm0 + 0.5 * lm1 + 0.75 * lm2 + lm3   # per-pixel burn level
    any_lm = bf_map > 0.0
    bfac = bf_map * bint_ref[...]                      # level * burn_intensity
    char_m = burn2d > 0.8
    tex_gain = jnp.where(burn2d > 0.3, 1.0 + texg_ref[...], jnp.float32(1.0))
    wf = wf_ref[...]

    for c in range(C):
        img_c = img_ref[c]
        col_c = (float(BURN_COLORS[0][c]) * lm0
                 + float(BURN_COLORS[1][c]) * lm12
                 + float(BURN_COLORS[3][c]) * lm3)
        # fused blend: img*(1-bf) + col*bf  ==  img + bf*(col - img)
        seg_c = jnp.where(any_lm, img_c + bfac * (col_c - img_c), img_c)
        seg_c = jnp.where(char_m, jnp.float32(0.05), seg_c)        # charred
        seg_c = jnp.clip(seg_c * tex_gain, 0.0, 1.0)               # burn texture
        seg_c = jnp.clip(seg_c * (1.0 + wf * WARMTH_CHAN[c]), 0.0, 1.0)
        out_ref[c] = seg_c                                          # single store


def pizza_segment_effect(img, angle_map, edge_noise, tex_noise, seg_params,
                         *, row_tile=None):
    """Hoist per-pixel combined fields with plain JAX, then one Pallas pass."""
    Cc, H, W = img.shape
    sp = jnp.asarray(seg_params, jnp.float32)
    n_seg = int(sp.shape[0])

    # ---- segment-invariant fields (computed ONCE) ----
    y = jnp.arange(H, dtype=jnp.float32)[:, None] * (2.0 / (H - 1)) - 1.0
    x = jnp.arange(W, dtype=jnp.float32)[None, :] * (2.0 / (W - 1)) - 1.0
    dist_c = jnp.sqrt(x * x + y * y)                      # (H, W)
    radius = sp[0, P_RADIUS]       # all segments share the radius by construction
    inpizza = (dist_c <= radius).astype(jnp.float32)
    # Normalized edge-burn mask: exp(3*(d - thresh)) = exp(-3*thresh)*exp(3*d),
    # and the per-segment constant cancels in (x-min)/(max-min) -> seg-invariant.
    ew = jnp.exp(3.0 * (dist_c + edge_noise))
    edge_mask = (ew - ew.min()) / (ew.max() - ew.min())
    wf_base = jnp.exp(-dist_c * 2.0) * 0.5 + 0.5

    # ---- per-pixel parameter maps (wedges disjoint & uniform -> floor index) ----
    seg_size = 2.0 * math.pi / n_seg
    seg_idx = jnp.clip(jnp.floor(angle_map * (1.0 / seg_size)).astype(jnp.int32),
                       0, n_seg - 1)
    burn_eff = sp[:, P_BINT] * sp[:, P_BURNFLAG]     # burn disabled -> 0
    warm_eff = sp[:, P_WARMTH] * sp[:, P_WARMFLAG]   # warmth disabled -> 0
    tex_eff = sp[:, P_TEXFLAG]
    burn_int_px = jnp.take(burn_eff, seg_idx)
    warm_px = jnp.take(warm_eff, seg_idx)
    tex_px = jnp.take(tex_eff, seg_idx)

    burn2d_map = edge_mask * burn_int_px * inpizza
    bint_map = burn_int_px * inpizza
    texg_map = tex_px * tex_noise            # gated in-kernel by burn2d > 0.3
    wf_map = wf_base * warm_px * inpizza
    img = jnp.asarray(img, jnp.float32)

    # ---- lane-dense W: pad to a multiple of 128 so stores are unmasked vst ----
    W_pad = ((W + 127) // 128) * 128
    if W_pad != W:
        pw = W_pad - W
        pad2 = lambda a: jnp.pad(a, ((0, 0), (0, pw)))
        burn2d_map, bint_map, texg_map, wf_map = map(
            pad2, (burn2d_map, bint_map, texg_map, wf_map))
        img = jnp.pad(img, ((0, 0), (0, 0), (0, pw)))

    # ---- row-slab tiling from an explicit VMEM budget (v7x-safe) ----
    n_planes = 4 + 2 * Cc                    # 4 fields + img in + out
    if row_tile is None:
        budget = 16 * 1024 * 1024            # double-buffered footprint cap
        per_row = n_planes * W_pad * 4 * 2
        cap = max(8, (budget // per_row) // 8 * 8)
        row_tile = H
        if H % 8 == 0:
            divs = [r for r in range(8, H + 1, 8) if H % r == 0 and r <= cap]
            if divs:
                row_tile = divs[-1]
                multi = [r for r in divs if H // r >= 2]   # >=2 steps: megacore
                if multi:
                    row_tile = multi[-1]
    grid = (H // row_tile,)

    tile_bytes = n_planes * row_tile * W_pad * 4 * 2
    vmem_limit = int(min(100 * 1024 * 1024, max(16 * 1024 * 1024, tile_bytes * 2)))

    grid_spec = pltpu.PrefetchScalarGridSpec(
        num_scalar_prefetch=0,
        grid=grid,
        in_specs=[
            pl.BlockSpec((row_tile, W_pad), lambda i: (i, 0)),        # burn2d
            pl.BlockSpec((row_tile, W_pad), lambda i: (i, 0)),        # burn_int
            pl.BlockSpec((row_tile, W_pad), lambda i: (i, 0)),        # tex noise
            pl.BlockSpec((row_tile, W_pad), lambda i: (i, 0)),        # warmth
            pl.BlockSpec((Cc, row_tile, W_pad), lambda i: (0, i, 0)),  # image
        ],
        out_specs=pl.BlockSpec((Cc, row_tile, W_pad), lambda i: (0, i, 0)),
    )
    out = pl.pallas_call(
        pizza_segment_kernel,
        out_shape=jax.ShapeDtypeStruct((Cc, H, W_pad), jnp.float32),
        grid_spec=grid_spec,
        compiler_params=pltpu.CompilerParams(
            dimension_semantics=("parallel",),
            vmem_limit_bytes=vmem_limit),
    )(burn2d_map, bint_map, texg_map, wf_map, img)
    return out[:, :, :W] if W_pad != W else out


def make_seg_params(num_segments, burning_min=0.0, burning_max=0.9, seed=0):
    """Deterministic draw of all Python-level random scalars in the forward."""
    rng = random.Random(seed)
    pizza_radius = rng.uniform(0.7, 0.9)
    seg_size = 2.0 * math.pi / num_segments
    params = np.zeros((num_segments, NPARAM), np.float32)
    for i in range(num_segments):
        bi_sample = rng.uniform(0.0, 1.0)
        burn_flag = 1.0 if bi_sample > 0.1 else 0.0
        bmin = burning_min + bi_sample * 0.3
        bmax = min(burning_min + bi_sample * 0.6, burning_max)
        thresh = rng.uniform(0.6, 0.8)                  # edge-burn threshold
        burn_int = rng.uniform(bmin, bmax)              # burning_effect intensity
        tex_flag = 1.0 if rng.random() < 0.7 else 0.0   # texture noise prob
        warm_flag = 1.0 if rng.random() < 0.5 else 0.0  # oven-effect prob
        effect_strength = rng.uniform(0.5, 1.0)
        warmth = rng.uniform(0.05, 0.15) * effect_strength
        params[i, :9] = [i * seg_size, (i + 1) * seg_size, pizza_radius,
                         burn_flag, thresh, burn_int, tex_flag, warm_flag,
                         warmth]
    return params


def reference(img, angle_map, edge_noise, tex_noise, seg_params):
    """Pure-numpy replica of the modeled forward pass for validation."""
    img = np.asarray(img, np.float32)
    angle_map = np.asarray(angle_map, np.float32)
    edge_noise = np.asarray(edge_noise, np.float32)
    tex_noise = np.asarray(tex_noise, np.float32)
    Cc, H, W = img.shape
    y = (np.arange(H, dtype=np.float32)[:, None] * (2.0 / (H - 1)) - 1.0)
    x = (np.arange(W, dtype=np.float32)[None, :] * (2.0 / (W - 1)) - 1.0)
    y = np.broadcast_to(y, (H, W)).astype(np.float32)
    x = np.broadcast_to(x, (H, W)).astype(np.float32)
    dist_c = np.sqrt(x * x + y * y)
    out = img.copy()
    for p in np.asarray(seg_params, np.float32):
        (start, end, radius, burn_flag, thresh,
         burn_int, tex_flag, warm_flag, warmth) = p[:9]
        ew = np.exp(3.0 * (dist_c + edge_noise - thresh))
        burn2d = (ew - ew.min()) / (ew.max() - ew.min()) * burn_int
        wf = warmth * (np.exp(-dist_c * 2.0) * 0.5 + 0.5)
        seg = img.copy()
        for lvl, col in zip(BURN_LEVELS, BURN_COLORS):
            lm = (burn2d > lvl * 0.8) & (burn2d <= lvl)
            bf = lvl * burn_int
            blended = img * (1.0 - bf) + col.reshape(3, 1, 1) * bf
            seg = np.where(lm[None], blended, seg)
        seg = np.where((burn2d > 0.8)[None], np.float32(0.05), seg)
        if tex_flag > 0.5:
            seg = np.where((burn2d > 0.3)[None], seg * (1.0 + tex_noise[None]), seg)
        seg = np.clip(seg, 0.0, 1.0)
        if burn_flag <= 0.5:
            seg = img.copy()
        if warm_flag > 0.5:
            chan = np.array(WARMTH_CHAN, np.float32).reshape(3, 1, 1)
            seg = np.clip(seg * (1.0 + wf[None] * chan), 0.0, 1.0)
        wedge = ((angle_map >= start) & (angle_map < end)).astype(np.float32)
        pizza = (dist_c <= radius).astype(np.float32)
        out = np.where(((wedge * pizza) > 0.0)[None], seg, out)
    return out


if __name__ == "__main__":
    H = W = 128
    # deterministic draw in [4, 8] segments (torch: random.randint(4, 8))
    NUM_SEGMENTS = 6

    key = jax.random.PRNGKey(0)
    k_img, k_en, k_tn = jax.random.split(key, 3)
    img = jax.random.uniform(k_img, (C, H, W), jnp.float32)
    edge_noise = jax.random.normal(k_en, (H, W), jnp.float32) * 0.05
    tex_noise = jax.random.normal(k_tn, (H, W), jnp.float32) * 0.05

    # angle grid computed once with plain JAX in the wrapper's caller
    yl = jnp.arange(H, dtype=jnp.float32)[:, None] * (2.0 / (H - 1)) - 1.0
    xl = jnp.arange(W, dtype=jnp.float32)[None, :] * (2.0 / (W - 1)) - 1.0
    ang = jnp.arctan2(jnp.broadcast_to(yl, (H, W)), jnp.broadcast_to(xl, (H, W)))
    angle_map = jnp.where(ang < 0, ang + 2.0 * math.pi, ang).astype(jnp.float32)

    seg_params = jnp.asarray(make_seg_params(NUM_SEGMENTS), jnp.float32)

    out = pizza_segment_effect(img, angle_map, edge_noise, tex_noise, seg_params)
    out = jax.block_until_ready(out)

    ref = reference(img, angle_map, edge_noise, tex_noise, seg_params)
    diff = np.abs(np.asarray(out) - ref)
    # tolerate rare pixels flipping across hard thresholds / wedge boundaries
    frac_bad = float(np.mean(diff > 1e-3))
    assert out.shape == (C, H, W) and out.dtype == jnp.float32
    assert frac_bad < 5e-3, f"mismatch fraction too high: {frac_bad}"
    print("KERNEL_OK")
</pallas_src>

<mosaic_0001>
module attributes {stable_mosaic.version = 11 : i64} {
  func.func @pizza_segment_kernel(%arg0: i32, %arg1: memref<64x128xf32, #tpu.memory_space<vmem>>, %arg2: memref<64x128xf32, #tpu.memory_space<vmem>>, %arg3: memref<64x128xf32, #tpu.memory_space<vmem>>, %arg4: memref<64x128xf32, #tpu.memory_space<vmem>>, %arg5: memref<3x64x128xf32, #tpu.memory_space<vmem>>, %arg6: memref<3x64x128xf32, #tpu.memory_space<vmem>>) attributes {dimension_semantics = [#tpu.dimension_semantics<parallel>], iteration_bounds = array<i64: 2>, scalar_prefetch = 0 : i64, scratch_operands = 0 : i64, tpu.core_type = #tpu.core_type<tc>, window_params = [{transform_indices = @transform_0, window_bounds = array<i64: 64, 128>}, {transform_indices = @transform_1, window_bounds = array<i64: 64, 128>}, {transform_indices = @transform_2, window_bounds = array<i64: 64, 128>}, {transform_indices = @transform_3, window_bounds = array<i64: 64, 128>}, {transform_indices = @transform_4, window_bounds = array<i64: 3, 64, 128>}, {transform_indices = @transform_5, window_bounds = array<i64: 3, 64, 128>}]} {
    %c0 = arith.constant 0 : index
    %c0_0 = arith.constant 0 : index
    %0 = vector.load %arg1[%c0, %c0_0] : memref<64x128xf32, #tpu.memory_space<vmem>>, vector<64x128xf32>
    %cst = arith.constant 2.000000e-01 : f32
    %1 = vector.broadcast %cst : f32 to vector<64x128xf32>
    %2 = arith.cmpf ogt, %0, %1 : vector<64x128xf32>
    %cst_1 = arith.constant 2.500000e-01 : f32
    %3 = vector.broadcast %cst_1 : f32 to vector<64x128xf32>
    %4 = arith.cmpf ole, %0, %3 : vector<64x128xf32>
    %5 = arith.andi %2, %4 : vector<64x128xi1>
    %6 = arith.extui %5 : vector<64x128xi1> to vector<64x128xi32>
    %7 = arith.sitofp %6 : vector<64x128xi32> to vector<64x128xf32>
    %cst_2 = arith.constant 4.000000e-01 : f32
    %8 = vector.broadcast %cst_2 : f32 to vector<64x128xf32>
    %9 = arith.cmpf ogt, %0, %8 : vector<64x128xf32>
    %cst_3 = arith.constant 5.000000e-01 : f32
    %10 = vector.broadcast %cst_3 : f32 to vector<64x128xf32>
    %11 = arith.cmpf ole, %0, %10 : vector<64x128xf32>
    %12 = arith.andi %9, %11 : vector<64x128xi1>
    %13 = arith.extui %12 : vector<64x128xi1> to vector<64x128xi32>
    %14 = arith.sitofp %13 : vector<64x128xi32> to vector<64x128xf32>
    %cst_4 = arith.constant 6.000000e-01 : f32
    %15 = vector.broadcast %cst_4 : f32 to vector<64x128xf32>
    %16 = arith.cmpf ogt, %0, %15 : vector<64x128xf32>
    %cst_5 = arith.constant 7.500000e-01 : f32
    %17 = vector.broadcast %cst_5 : f32 to vector<64x128xf32>
    %18 = arith.cmpf ole, %0, %17 : vector<64x128xf32>
    %19 = arith.andi %16, %18 : vector<64x128xi1>
    %20 = arith.extui %19 : vector<64x128xi1> to vector<64x128xi32>
    %21 = arith.sitofp %20 : vector<64x128xi32> to vector<64x128xf32>
    %cst_6 = arith.constant 8.000000e-01 : f32
    %22 = vector.broadcast %cst_6 : f32 to vector<64x128xf32>
    %23 = arith.cmpf ogt, %0, %22 : vector<64x128xf32>
    %cst_7 = arith.constant 1.000000e+00 : f32
    %24 = vector.broadcast %cst_7 : f32 to vector<64x128xf32>
    %25 = arith.cmpf ole, %0, %24 : vector<64x128xf32>
    %26 = arith.andi %23, %25 : vector<64x128xi1>
    %27 = arith.extui %26 : vector<64x128xi1> to vector<64x128xi32>
    %28 = arith.sitofp %27 : vector<64x128xi32> to vector<64x128xf32>
    %29 = arith.addf %14, %21 : vector<64x128xf32>
    %cst_8 = arith.constant 2.500000e-01 : f32
    %30 = vector.broadcast %cst_8 : f32 to vector<64x128xf32>
    %31 = arith.mulf %30, %7 : vector<64x128xf32>
    %cst_9 = arith.constant 5.000000e-01 : f32
    %32 = vector.broadcast %cst_9 : f32 to vector<64x128xf32>
    %33 = arith.mulf %32, %14 : vector<64x128xf32>
    %34 = arith.addf %31, %33 : vector<64x128xf32>
    %cst_10 = arith.constant 7.500000e-01 : f32
    %35 = vector.broadcast %cst_10 : f32 to vector<64x128xf32>
    %36 = arith.mulf %35, %21 : vector<64x128xf32>
    %37 = arith.addf %34, %36 : vector<64x128xf32>
    %38 = arith.addf %37, %28 : vector<64x128xf32>
    %cst_11 = arith.constant 0.000000e+00 : f32
    %39 = vector.broadcast %cst_11 : f32 to vector<64x128xf32>
    %40 = arith.cmpf ogt, %38, %39 : vector<64x128xf32>
    %c0_12 = arith.constant 0 : index
    %c0_13 = arith.constant 0 : index
    %41 = vector.load %arg2[%c0_12, %c0_13] : memref<64x128xf32, #tpu.memory_space<vmem>>, vector<64x128xf32>
    %42 = arith.mulf %38, %41 : vector<64x128xf32>
    %cst_14 = arith.constant 8.000000e-01 : f32
    %43 = vector.broadcast %cst_14 : f32 to vector<64x128xf32>
    %44 = arith.cmpf ogt, %0, %43 : vector<64x128xf32>
    %cst_15 = arith.constant 3.000000e-01 : f32
    %45 = vector.broadcast %cst_15 : f32 to vector<64x128xf32>
    %46 = arith.cmpf ogt, %0, %45 : vector<64x128xf32>
    %c0_16 = arith.constant 0 : index
    %c0_17 = arith.constant 0 : index
    %47 = vector.load %arg3[%c0_16, %c0_17] : memref<64x128xf32, #tpu.memory_space<vmem>>, vector<64x128xf32>
    %cst_18 = arith.constant 1.000000e+00 : f32
    %48 = vector.broadcast %cst_18 : f32 to vector<64x128xf32>
    %49 = arith.addf %48, %47 : vector<64x128xf32>
    %cst_19 = arith.constant 1.000000e+00 : f32
    %50 = vector.broadcast %cst_19 : f32 to vector<64x128xf32>
    %51 = arith.select %46, %49, %50 : vector<64x128xi1>, vector<64x128xf32>
    %c0_20 = arith.constant 0 : index
    %c0_21 = arith.constant 0 : index
    %52 = vector.load %arg4[%c0_20, %c0_21] : memref<64x128xf32, #tpu.memory_space<vmem>>, vector<64x128xf32>
    %c0_22 = arith.constant 0 : index
    %c0_23 = arith.constant 0 : index
    %c0_24 = arith.constant 0 : index
    %53 = vector.load %arg5[%c0_22, %c0_23, %c0_24] : memref<3x64x128xf32, #tpu.memory_space<vmem>>, vector<1x64x128xf32>
    %54 = vector.shape_cast %53 : vector<1x64x128xf32> to vector<64x128xf32>
    %cst_25 = arith.constant 6.500000e-01 : f32
    %55 = vector.broadcast %cst_25 : f32 to vector<64x128xf32>
    %56 = arith.mulf %55, %7 : vector<64x128xf32>
    %cst_26 = arith.constant 3.500000e-01 : f32
    %57 = vector.broadcast %cst_26 : f32 to vector<64x128xf32>
    %58 = arith.mulf %57, %29 : vector<64x128xf32>
    %59 = arith.addf %56, %58 : vector<64x128xf32>
    %cst_27 = arith.constant 1.500000e-01 : f32
    %60 = vector.broadcast %cst_27 : f32 to vector<64x128xf32>
    %61 = arith.mulf %60, %28 : vector<64x128xf32>
    %62 = arith.addf %59, %61 : vector<64x128xf32>
    %63 = arith.subf %62, %54 : vector<64x128xf32>
    %64 = arith.mulf %42, %63 : vector<64x128xf32>
    %65 = arith.addf %54, %64 : vector<64x128xf32>
    %66 = arith.select %40, %65, %54 : vector<64x128xi1>, vector<64x128xf32>
    %cst_28 = arith.constant 5.000000e-02 : f32
    %67 = vector.broadcast %cst_28 : f32 to vector<64x128xf32>
    %68 = arith.select %44, %67, %66 : vector<64x128xi1>, vector<64x128xf32>
    %69 = arith.mulf %68, %51 : vector<64x128xf32>
    %cst_29 = arith.constant 0.000000e+00 : f32
    %cst_30 = arith.constant 1.000000e+00 : f32
    %70 = vector.broadcast %cst_29 : f32 to vector<64x128xf32>
    %71 = arith.maximumf %70, %69 : vector<64x128xf32>
    %72 = vector.broadcast %cst_30 : f32 to vector<64x128xf32>
    %73 = arith.minimumf %72, %71 : vector<64x128xf32>
    %cst_31 = arith.constant 1.000000e+00 : f32
    %74 = vector.broadcast %cst_31 : f32 to vector<64x128xf32>
    %75 = arith.mulf %52, %74 : vector<64x128xf32>
    %cst_32 = arith.constant 1.000000e+00 : f32
    %76 = vector.broadcast %cst_32 : f32 to vector<64x128xf32>
    %77 = arith.addf %76, %75 : vector<64x128xf32>
    %78 = arith.mulf %73, %77 : vector<64x128xf32>
    %cst_33 = arith.constant 0.000000e+00 : f32
    %cst_34 = arith.constant 1.000000e+00 : f32
    %79 = vector.broadcast %cst_33 : f32 to vector<64x128xf32>
    %80 = arith.maximumf %79, %78 : vector<64x128xf32>
    %81 = vector.broadcast %cst_34 : f32 to vector<64x128xf32>
    %82 = arith.minimumf %81, %80 : vector<64x128xf32>
    %c0_35 = arith.constant 0 : index
    %c0_36 = arith.constant 0 : index
    %c0_37 = arith.constant 0 : index
    %83 = vector.load %arg6[%c0_35, %c0_36, %c0_37] : memref<3x64x128xf32, #tpu.memory_space<vmem>>, vector<1x64x128xf32>
    %84 = vector.shape_cast %83 : vector<1x64x128xf32> to vector<64x128xf32>
    %85 = vector.shape_cast %82 : vector<64x128xf32> to vector<1x64x128xf32>
    tpu.vector_store %arg6[%c0_35, %c0_36, %c0_37], %85 {strides = array<i32>} : memref<3x64x128xf32, #tpu.memory_space<vmem>>, vector<1x64x128xf32>,
    %c1 = arith.constant 1 : index
    %c0_38 = arith.constant 0 : index
    %c0_39 = arith.constant 0 : index
    %86 = vector.load %arg5[%c1, %c0_38, %c0_39] : memref<3x64x128xf32, #tpu.memory_space<vmem>>, vector<1x64x128xf32>
    %87 = vector.shape_cast %86 : vector<1x64x128xf32> to vector<64x128xf32>
    %cst_40 = arith.constant 4.000000e-01 : f32
    %88 = vector.broadcast %cst_40 : f32 to vector<64x128xf32>
    %89 = arith.mulf %88, %7 : vector<64x128xf32>
    %cst_41 = arith.constant 2.000000e-01 : f32
    %90 = vector.broadcast %cst_41 : f32 to vector<64x128xf32>
    %91 = arith.mulf %90, %29 : vector<64x128xf32>
    %92 = arith.addf %89, %91 : vector<64x128xf32>
    %cst_42 = arith.constant 1.000000e-01 : f32
    %93 = vector.broadcast %cst_42 : f32 to vector<64x128xf32>
    %94 = arith.mulf %93, %28 : vector<64x128xf32>
    %95 = arith.addf %92, %94 : vector<64x128xf32>
    %96 = arith.subf %95, %87 : vector<64x128xf32>
    %97 = arith.mulf %42, %96 : vector<64x128xf32>
    %98 = arith.addf %87, %97 : vector<64x128xf32>
    %99 = arith.select %40, %98, %87 : vector<64x128xi1>, vector<64x128xf32>
    %cst_43 = arith.constant 5.000000e-02 : f32
    %100 = vector.broadcast %cst_43 : f32 to vector<64x128xf32>
    %101 = arith.select %44, %100, %99 : vector<64x128xi1>, vector<64x128xf32>
    %102 = arith.mulf %101, %51 : vector<64x128xf32>
    %cst_44 = arith.constant 0.000000e+00 : f32
    %cst_45 = arith.constant 1.000000e+00 : f32
    %103 = vector.broadcast %cst_44 : f32 to vector<64x128xf32>
    %104 = arith.maximumf %103, %102 : vector<64x128xf32>
    %105 = vector.broadcast %cst_45 : f32 to vector<64x128xf32>
    %106 = arith.minimumf %105, %104 : vector<64x128xf32>
    %cst_46 = arith.constant 3.000000e-01 : f32
    %107 = vector.broadcast %cst_46 : f32 to vector<64x128xf32>
    %108 = arith.mulf %52, %107 : vector<64x128xf32>
    %cst_47 = arith.constant 1.000000e+00 : f32
    %109 = vector.broadcast %cst_47 : f32 to vector<64x128xf32>
    %110 = arith.addf %109, %108 : vector<64x128xf32>
    %111 = arith.mulf %106, %110 : vector<64x128xf32>
    %cst_48 = arith.constant 0.000000e+00 : f32
    %cst_49 = arith.constant 1.000000e+00 : f32
    %112 = vector.broadcast %cst_48 : f32 to vector<64x128xf32>
    %113 = arith.maximumf %112, %111 : vector<64x128xf32>
    %114 = vector.broadcast %cst_49 : f32 to vector<64x128xf32>
    %115 = arith.minimumf %114, %113 : vector<64x128xf32>
    %c1_50 = arith.constant 1 : index
    %c0_51 = arith.constant 0 : index
    %c0_52 = arith.constant 0 : index
    %116 = vector.load %arg6[%c1_50, %c0_51, %c0_52] : memref<3x64x128xf32, #tpu.memory_space<vmem>>, vector<1x64x128xf32>
    %117 = vector.shape_cast %116 : vector<1x64x128xf32> to vector<64x128xf32>
    %118 = vector.shape_cast %115 : vector<64x128xf32> to vector<1x64x128xf32>
    tpu.vector_store %arg6[%c1_50, %c0_51, %c0_52], %118 {strides = array<i32>} : memref<3x64x128xf32, #tpu.memory_space<vmem>>, vector<1x64x128xf32>,
    %c2 = arith.constant 2 : index
    %c0_53 = arith.constant 0 : index
    %c0_54 = arith.constant 0 : index
    %119 = vector.load %arg5[%c2, %c0_53, %c0_54] : memref<3x64x128xf32, #tpu.memory_space<vmem>>, vector<1x64x128xf32>
    %120 = vector.shape_cast %119 : vector<1x64x128xf32> to vector<64x128xf32>
    %cst_55 = arith.constant 2.500000e-01 : f32
    %121 = vector.broadcast %cst_55 : f32 to vector<64x128xf32>
    %122 = arith.mulf %121, %7 : vector<64x128xf32>
    %cst_56 = arith.constant 1.500000e-01 : f32
    %123 = vector.broadcast %cst_56 : f32 to vector<64x128xf32>
    %124 = arith.mulf %123, %29 : vector<64x128xf32>
    %125 = arith.addf %122, %124 : vector<64x128xf32>
    %cst_57 = arith.constant 1.000000e-01 : f32
    %126 = vector.broadcast %cst_57 : f32 to vector<64x128xf32>
    %127 = arith.mulf %126, %28 : vector<64x128xf32>
    %128 = arith.addf %125, %127 : vector<64x128xf32>
    %129 = arith.subf %128, %120 : vector<64x128xf32>
    %130 = arith.mulf %42, %129 : vector<64x128xf32>
    %131 = arith.addf %120, %130 : vector<64x128xf32>
    %132 = arith.select %40, %131, %120 : vector<64x128xi1>, vector<64x128xf32>
    %cst_58 = arith.constant 5.000000e-02 : f32
    %133 = vector.broadcast %cst_58 : f32 to vector<64x128xf32>
    %134 = arith.select %44, %133, %132 : vector<64x128xi1>, vector<64x128xf32>
    %135 = arith.mulf %134, %51 : vector<64x128xf32>
    %cst_59 = arith.constant 0.000000e+00 : f32
    %cst_60 = arith.constant 1.000000e+00 : f32
    %136 = vector.broadcast %cst_59 : f32 to vector<64x128xf32>
    %137 = arith.maximumf %136, %135 : vector<64x128xf32>
    %138 = vector.broadcast %cst_60 : f32 to vector<64x128xf32>
    %139 = arith.minimumf %138, %137 : vector<64x128xf32>
    %cst_61 = arith.constant -2.000000e-01 : f32
    %140 = vector.broadcast %cst_61 : f32 to vector<64x128xf32>
    %141 = arith.mulf %52, %140 : vector<64x128xf32>
    %cst_62 = arith.constant 1.000000e+00 : f32
    %142 = vector.broadcast %cst_62 : f32 to vector<64x128xf32>
    %143 = arith.addf %142, %141 : vector<64x128xf32>
    %144 = arith.mulf %139, %143 : vector<64x128xf32>
    %cst_63 = arith.constant 0.000000e+00 : f32
    %cst_64 = arith.constant 1.000000e+00 : f32
    %145 = vector.broadcast %cst_63 : f32 to vector<64x128xf32>
    %146 = arith.maximumf %145, %144 : vector<64x128xf32>
    %147 = vector.broadcast %cst_64 : f32 to vector<64x128xf32>
    %148 = arith.minimumf %147, %146 : vector<64x128xf32>
    %c2_65 = arith.constant 2 : index
    %c0_66 = arith.constant 0 : index
    %c0_67 = arith.constant 0 : index
    %149 = vector.load %arg6[%c2_65, %c0_66, %c0_67] : memref<3x64x128xf32, #tpu.memory_space<vmem>>, vector<1x64x128xf32>
    %150 = vector.shape_cast %149 : vector<1x64x128xf32> to vector<64x128xf32>
    %151 = vector.shape_cast %148 : vector<64x128xf32> to vector<1x64x128xf32>
    tpu.vector_store %arg6[%c2_65, %c0_66, %c0_67], %151 {strides = array<i32>} : memref<3x64x128xf32, #tpu.memory_space<vmem>>, vector<1x64x128xf32>,
    return
  }
  func.func @transform_0(%arg0: i32) -> (i32, i32) {
    %c0_i32 = arith.constant 0 : i32
    %c0_i32_0 = arith.constant 0 : i32
    return %arg0, %c0_i32 : i32, i32
  }
  func.func @transform_1(%arg0: i32) -> (i32, i32) {
    %c0_i32 = arith.constant 0 : i32
    %c0_i32_0 = arith.constant 0 : i32
    return %arg0, %c0_i32 : i32, i32
  }
  func.func @transform_2(%arg0: i32) -> (i32, i32) {
    %c0_i32 = arith.constant 0 : i32
    %c0_i32_0 = arith.constant 0 : i32
    return %arg0, %c0_i32 : i32, i32
  }
  func.func @transform_3(%arg0: i32) -> (i32, i32) {
    %c0_i32 = arith.constant 0 : i32
    %c0_i32_0 = arith.constant 0 : i32
    return %arg0, %c0_i32 : i32, i32
  }
  func.func @transform_4(%arg0: i32) -> (i32, i32, i32) {
    %c0_i32 = arith.constant 0 : i32
    %c0_i32_0 = arith.constant 0 : i32
    %c0_i32_1 = arith.constant 0 : i32
    return %c0_i32, %arg0, %c0_i32_0 : i32, i32, i32
  }
  func.func @transform_5(%arg0: i32) -> (i32, i32, i32) {
    %c0_i32 = arith.constant 0 : i32
    %c0_i32_0 = arith.constant 0 : i32
    %c0_i32_1 = arith.constant 0 : i32
    return %c0_i32, %arg0, %c0_i32_0 : i32, i32, i32
  }
}

</mosaic_0001>

<llo_original>
// kernel: tpu_custom_call.1
$region0: #{tpu_custom_call.1}
  #allocation0 [shape = 'u32[]', space=smem, size = 0x4, offset = 0x4, fixed_abs, tag = 'smem constant byte address 0x4 - core index']
  #allocation1 [shape = 'u32[144,128]{1,0:T(1,128)}', space=vmem, size = 0x12000, scoped, tag = 'internal scratch']
  #allocation12 [shape = 's32[]', space=sflag, size = 0x4, offset = 0, fixed_abs, tag = 'sflag constant byte address 0x0 - dummy sync flag']
  #allocation14 [shape = 's32[]', space=sflag, size = 0x4, offset = 0, fixed_abs, tag = 'sflag constant byte address 0x0 - dummy sync flag']
  %s0 = inlined_call_operand.hbm [shape: f32[128,128], index: 0, kind: input, shape index: {}]
  %s1 = inlined_call_operand.hbm [shape: f32[128,128], index: 1, kind: input, shape index: {}]
  %s2 = inlined_call_operand.hbm [shape: f32[128,128], index: 2, kind: input, shape index: {}]
  %s3 = inlined_call_operand.hbm [shape: f32[128,128], index: 3, kind: input, shape index: {}]
  %s4 = inlined_call_operand.hbm [shape: f32[3,128,128], index: 4, kind: input, shape index: {}]
  %s5 = inlined_call_operand.hbm [shape: f32[3,128,128], index: 5, kind: output, shape index: {}]
  %s6 = sld [smem:[#allocation0]]
  $region73: #{tpu_custom_call.1} parent=0
    _
  %s8 = ssub.s32 1, %s6
  %s9 = scalar_select 0, %s8, %s6
  $region1: #{tpu_custom_call.1} parent=0
    #allocation2 [shape = 'u8[65536]{0}', space=vmem, size = 0x10000, scoped, tag = 'input window, operand 0']
    #allocation3 [shape = 's32[2]{0}', space=sflag, size = 0x8, scoped, tag = 'scoped memory for tpu_custom_call.1']
    #allocation4 [shape = 's32[2]{0}', space=sflag, size = 0x8, scoped, tag = 'scoped memory for tpu_custom_call.1']
    #allocation5 [shape = 'u8[65536]{0}', space=vmem, size = 0x10000, scoped, tag = 'input window, operand 1']
    #allocation6 [shape = 's32[2]{0}', space=sflag, size = 0x8, scoped, tag = 'scoped memory for tpu_custom_call.1']
    #allocation7 [shape = 'u8[65536]{0}', space=vmem, size = 0x10000, scoped, tag = 'input window, operand 2']
    #allocation8 [shape = 'u8[65536]{0}', space=vmem, size = 0x10000, scoped, tag = 'input window, operand 3']
    #allocation9 [shape = 's32[2]{0}', space=sflag, size = 0x8, scoped, tag = 'scoped memory for tpu_custom_call.1']
    #allocation10 [shape = 'u8[196608]{0}', space=vmem, size = 0x30000, scoped, tag = 'input window, operand 4']
    #allocation11 [shape = 'u8[196608]{0}', space=vmem, size = 0x30000, scoped, tag = 'output window, operand 0']
    %10 = vsyncpa [#allocation3], 0
    %s11 = scalar_lea.sflag [#allocation3], 1
    %12 = vsyncpa %s11, 0
    %13 = vsyncpa [#allocation6], 0
    %s14 = scalar_lea.sflag [#allocation6], 1
    %15 = vsyncpa %s14, 0
    %16 = vsyncpa [#allocation9], 0
    %s17 = scalar_lea.sflag [#allocation9], 1
    %18 = vsyncpa %s17, 0
    %19 = vsyncpa [#allocation4], 0
    %s20 = scalar_lea.sflag [#allocation4], 1
    %21 = vsyncpa %s20, 0
    loop: start=0, step=1, limit=4
    $region2: #{tpu_custom_call.1} parent=1 // loop_pre_header
      _
    $region3: #{tpu_custom_call.1} parent=1 // loop_header
      %s23 = sphi 0, %s27
      %p24 = scmp.ge.s32.totalorder %s23, 4
      %s33 = sphi 0, %s35
      %s36 = sphi 0, %s33
      %s37 = sphi 0, %s36
      %s53 = sphi 0, %s37
      %s59 = sphi 0, %s61
      %s62 = sphi 0, %s59
      %s63 = sphi 0, %s62
      %s79 = sphi 0, %s63
      %s85 = sphi 0, %s87
      %s88 = sphi 0, %s85
      %s89 = sphi 0, %s88
      %s105 = sphi 0, %s89
      %s111 = sphi 0, %s113
      %s114 = sphi 0, %s111
      %s115 = sphi 0, %s114
      %s131 = sphi 0, %s115
      %s137 = sphi 0, %s139
      %s140 = sphi 0, %s137
      %s141 = sphi 0, %s140
      %s157 = sphi 0, %s141
      %s163 = sphi 0, %s165
      %s166 = sphi 0, %s163
      %s167 = sphi 0, %s166
      %s183 = sphi 0, %s167
    $region4: #{tpu_custom_call.1} parent=1 // loop_header_branch
      %26 = sbr.rel (%p24) target = $region8
    $region5: #{tpu_custom_call.1} parent=1 // loop_body
      %s28 = ssub.s32 %s23, 1
      %s29 = ssub.s32 %s23, 2
      %s30 = sadd.s32 %s23, 1
      %s31 = ssub.s32 %s23, %s30
      %p32 = scmp.eq.s32.totalorder %s31, 0
      %s34 = sadd.s32 %s33, 1
      %s35 = scalar_select %p32, %s33, %s34
      %p38 = pneg %p32
      %p39 = scmp.eq.s32.totalorder %s23, 1
      %p40 = por %p38, %p39
      %p41 = scmp.ne.s32.totalorder %s33, %s36
      %p42 = scmp.eq.s32.totalorder %s23, 0
      %p43 = por %p41, %p42
      %p44 = scmp.ne.s32.totalorder %s33, %s36
      %p45 = scmp.eq.s32.totalorder %s28, 1
      %p46 = por %p44, %p45
      %p47 = scmp.ne.s32.totalorder %s36, %s37
      %p48 = scmp.eq.s32.totalorder %s28, 0
      %p49 = por %p47, %p48
      %p50 = scmp.ne.s32.totalorder %s36, %s37
      %p51 = scmp.eq.s32.totalorder %s29, 1
      %p52 = por %p50, %p51
      %p54 = scmp.ne.s32.totalorder %s37, %s53
      %p55 = scmp.eq.s32.totalorder %s29, 0
      %p56 = por %p54, %p55
      %s57 = ssub.s32 %s23, %s30
      %p58 = scmp.eq.s32.totalorder %s57, 0
      %s60 = sadd.s32 %s59, 1
      %s61 = scalar_select %p58, %s59, %s60
      %p64 = pneg %p58
      %p65 = scmp.eq.s32.totalorder %s23, 1
      %p66 = por %p64, %p65
      %p67 = scmp.ne.s32.totalorder %s59, %s62
      %p68 = scmp.eq.s32.totalorder %s23, 0
      %p69 = por %p67, %p68
      %p70 = scmp.ne.s32.totalorder %s59, %s62
      %p71 = scmp.eq.s32.totalorder %s28, 1
      %p72 = por %p70, %p71
      %p73 = scmp.ne.s32.totalorder %s62, %s63
      %p74 = scmp.eq.s32.totalorder %s28, 0
      %p75 = por %p73, %p74
      %p76 = scmp.ne.s32.totalorder %s62, %s63
      %p77 = scmp.eq.s32.totalorder %s29, 1
      %p78 = por %p76, %p77
      %p80 = scmp.ne.s32.totalorder %s63, %s79
      %p81 = scmp.eq.s32.totalorder %s29, 0
      %p82 = por %p80, %p81
      %s83 = ssub.s32 %s23, %s30
      %p84 = scmp.eq.s32.totalorder %s83, 0
      %s86 = sadd.s32 %s85, 1
      %s87 = scalar_select %p84, %s85, %s86
      %p90 = pneg %p84
      %p91 = scmp.eq.s32.totalorder %s23, 1
      %p92 = por %p90, %p91
      %p93 = scmp.ne.s32.totalorder %s85, %s88
      %p94 = scmp.eq.s32.totalorder %s23, 0
      %p95 = por %p93, %p94
      %p96 = scmp.ne.s32.totalorder %s85, %s88
      %p97 = scmp.eq.s32.totalorder %s28, 1
      %p98 = por %p96, %p97
      %p99 = scmp.ne.s32.totalorder %s88, %s89
      %p100 = scmp.eq.s32.totalorder %s28, 0
      %p101 = por %p99, %p100
      %p102 = scmp.ne.s32.totalorder %s88, %s89
      %p103 = scmp.eq.s32.totalorder %s29, 1
      %p104 = por %p102, %p103
      %p106 = scmp.ne.s32.totalorder %s89, %s105
      %p107 = scmp.eq.s32.totalorder %s29, 0
      %p108 = por %p106, %p107
      %s109 = ssub.s32 %s23, %s30
      %p110 = scmp.eq.s32.totalorder %s109, 0
      %s112 = sadd.s32 %s111, 1
      %s113 = scalar_select %p110, %s111, %s112
      %p116 = pneg %p110
      %p117 = scmp.eq.s32.totalorder %s23, 1
      %p118 = por %p116, %p117
      %p119 = scmp.ne.s32.totalorder %s111, %s114
      %p120 = scmp.eq.s32.totalorder %s23, 0
      %p121 = por %p119, %p120
      %p122 = scmp.ne.s32.totalorder %s111, %s114
      %p123 = scmp.eq.s32.totalorder %s28, 1
      %p124 = por %p122, %p123
      %p125 = scmp.ne.s32.totalorder %s114, %s115
      %p126 = scmp.eq.s32.totalorder %s28, 0
      %p127 = por %p125, %p126
      %p128 = scmp.ne.s32.totalorder %s114, %s115
      %p129 = scmp.eq.s32.totalorder %s29, 1
      %p130 = por %p128, %p129
      %p132 = scmp.ne.s32.totalorder %s115, %s131
      %p133 = scmp.eq.s32.totalorder %s29, 0
      %p134 = por %p132, %p133
      %s135 = ssub.s32 %s23, %s30
      %p136 = scmp.eq.s32.totalorder %s135, 0
      %s138 = sadd.s32 %s137, 1
      %s139 = scalar_select %p136, %s137, %s138
      %p142 = pneg %p136
      %p143 = scmp.eq.s32.totalorder %s23, 1
      %p144 = por %p142, %p143
      %p145 = scmp.ne.s32.totalorder %s137, %s140
      %p146 = scmp.eq.s32.totalorder %s23, 0
      %p147 = por %p145, %p146
      %p148 = scmp.ne.s32.totalorder %s137, %s140
      %p149 = scmp.eq.s32.totalorder %s28, 1
      %p150 = por %p148, %p149
      %p151 = scmp.ne.s32.totalorder %s140, %s141
      %p152 = scmp.eq.s32.totalorder %s28, 0
      %p153 = por %p151, %p152
      %p154 = scmp.ne.s32.totalorder %s140, %s141
      %p155 = scmp.eq.s32.totalorder %s29, 1
      %p156 = por %p154, %p155
      %p158 = scmp.ne.s32.totalorder %s141, %s157
      %p159 = scmp.eq.s32.totalorder %s29, 0
      %p160 = por %p158, %p159
      %s161 = ssub.s32 %s23, %s30
      %p162 = scmp.eq.s32.totalorder %s161, 0
      %s164 = sadd.s32 %s163, 1
      %s165 = scalar_select %p162, %s163, %s164
      %p168 = pneg %p162
      %p169 = scmp.eq.s32.totalorder %s23, 1
      %p170 = por %p168, %p169
      %p171 = scmp.ne.s32.totalorder %s163, %s166
      %p172 = scmp.eq.s32.totalorder %s23, 0
      %p173 = por %p171, %p172
      %p174 = scmp.ne.s32.totalorder %s163, %s166
      %p175 = scmp.eq.s32.totalorder %s28, 1
      %p176 = por %p174, %p175
      %p177 = scmp.ne.s32.totalorder %s166, %s167
      %p178 = scmp.eq.s32.totalorder %s28, 0
      %p179 = por %p177, %p178
      %p180 = scmp.ne.s32.totalorder %s166, %s167
      %p181 = scmp.eq.s32.totalorder %s29, 1
      %p182 = por %p180, %p181
      %p184 = scmp.ne.s32.totalorder %s167, %s183
      %p185 = scmp.eq.s32.totalorder %s29, 0
      %p186 = por %p184, %p185
      %p187 = scmp.le.s32.totalorder 1, %s23
      %p188 = scmp.lt.s32.totalorder %s23, 3
      %p189 = pnand %p187, %p188
      %p190 = pneg %p189
      // Predicated region
      $region9: #{tpu_custom_call.1} parent=5 // pred_check
        _
      $region10: #{tpu_custom_call.1} parent=5 // pred_check_branch
        %192 = sbr.rel (%p189) target = $region12
      $region11: #{tpu_custom_call.1} parent=5 // pred_region
        %s193 = ssub.s32 %s23, 1
      $region12: #{tpu_custom_call.1} parent=5 // pred_fallthru
        _
      %p194 = scmp.lt.s32.totalorder %s23, 2
      // Predicated region
      $region13: #{tpu_custom_call.1} parent=5 // pred_check
        %p195 = pneg %p194
      $region14: #{tpu_custom_call.1} parent=5 // pred_check_branch
        %197 = sbr.rel (%p195) target = $region16
      $region15: #{tpu_custom_call.1} parent=5 // pred_region
        // Predicated region
        $region17: #{tpu_custom_call.1} parent=15 // pred_check
          %p198 = pneg %p43
        $region18: #{tpu_custom_call.1} parent=15 // pred_check_branch
          %200 = sbr.rel (%p198) target = $region20
        $region19: #{tpu_custom_call.1} parent=15 // pred_region
          %s201 = sand.u32 %s33, 1
          %s202 = scalar_lea.sflag [#allocation3], %s201
          %s203 = sand.u32 %s33, 1
          %s204 = smul.addr %s203, 64
          %s205 = scalar_lea.vmem [#allocation2], %s204
          %s206 = smul.u32 8, %s23
          %s208 = ssub.s32 1024, 1024
          %209 = vsyncadd %s202, %s208
          %s210 = smul.addr %s206, 128
          %s211 = scalar_lea.hbm %s0, %s210
          %s212 = sshll.u32 %s205, 4
          %s213 = int_to_ptr.vmem [resolvable:$true] %s212
          %218 = dma.hbm_to_vmem [thread:$0]  %s211, 1024, %s213, %s202, 128, 128, 8
        $region20: #{tpu_custom_call.1} parent=15 // pred_fallthru
          _
        // Predicated region
        $region21: #{tpu_custom_call.1} parent=15 // pred_check
          %p219 = pneg %p69
        $region22: #{tpu_custom_call.1} parent=15 // pred_check_branch
          %221 = sbr.rel (%p219) target = $region24
        $region23: #{tpu_custom_call.1} parent=15 // pred_region
          %s222 = sand.u32 %s23, 1
          %s223 = scalar_lea.sflag [#allocation6], %s222
          %s224 = sand.u32 %s59, 1
          %s225 = smul.addr %s224, 64
          %s226 = scalar_lea.vmem [#allocation5], %s225
          %s227 = smul.u32 8, %s23
          %s229 = ssub.s32 1024, 1024
          %230 = vsyncadd %s223, %s229
          %s231 = smul.addr %s227, 128
          %s232 = scalar_lea.hbm %s1, %s231
          %s233 = sshll.u32 %s226, 4
          %s234 = int_to_ptr.vmem [resolvable:$true] %s233
          %239 = dma.hbm_to_vmem [thread:$0]  %s232, 1024, %s234, %s223, 128, 128, 8
        $region24: #{tpu_custom_call.1} parent=15 // pred_fallthru
          _
        // Predicated region
        $region25: #{tpu_custom_call.1} parent=15 // pred_check
          %p240 = pneg %p95
        $region26: #{tpu_custom_call.1} parent=15 // pred_check_branch
          %242 = sbr.rel (%p240) target = $region28
        $region27: #{tpu_custom_call.1} parent=15 // pred_region
          %s243 = sand.u32 %s23, 1
          %s244 = scalar_lea.sflag [#allocation6], %s243
          %s245 = sand.u32 %s85, 1
          %s246 = smul.addr %s245, 64
          %s247 = scalar_lea.vmem [#allocation7], %s246
          %s248 = smul.u32 8, %s23
          %s250 = ssub.s32 1024, 1024
          %251 = vsyncadd %s244, %s250
          %s252 = smul.addr %s248, 128
          %s253 = scalar_lea.hbm %s2, %s252
          %s254 = sshll.u32 %s247, 4
          %s255 = int_to_ptr.vmem [resolvable:$true] %s254
          %260 = dma.hbm_to_vmem [thread:$0]  %s253, 1024, %s255, %s244, 128, 128, 8
        $region28: #{tpu_custom_call.1} parent=15 // pred_fallthru
          _
        // Predicated region
        $region29: #{tpu_custom_call.1} parent=15 // pred_check
          %p261 = pneg %p121
        $region30: #{tpu_custom_call.1} parent=15 // pred_check_branch
          %263 = sbr.rel (%p261) target = $region32
        $region31: #{tpu_custom_call.1} parent=15 // pred_region
          %s264 = sand.u32 %s23, 1
          %s265 = scalar_lea.sflag [#allocation9], %s264
          %s266 = sand.u32 %s111, 1
          %s267 = smul.addr %s266, 64
          %s268 = scalar_lea.vmem [#allocation8], %s267
          %s269 = smul.u32 8, %s23
          %s271 = ssub.s32 1024, 1024
          %272 = vsyncadd %s265, %s271
          %s273 = smul.addr %s269, 128
          %s274 = scalar_lea.hbm %s3, %s273
          %s275 = sshll.u32 %s268, 4
          %s276 = int_to_ptr.vmem [resolvable:$true] %s275
          %281 = dma.hbm_to_vmem [thread:$0]  %s274, 1024, %s276, %s265, 128, 128, 8
        $region32: #{tpu_custom_call.1} parent=15 // pred_fallthru
          _
        // Predicated region
        $region33: #{tpu_custom_call.1} parent=15 // pred_check
          %p282 = pneg %p147
        $region34: #{tpu_custom_call.1} parent=15 // pred_check_branch
          %284 = sbr.rel (%p282) target = $region36
        $region35: #{tpu_custom_call.1} parent=15 // pred_region
          #allocation13 [shape = 'u32[6]{0}', space=smem, size = 0x18, scoped, tag = 'DMA stride descriptor']
          %s285 = sand.u32 %s23, 1
          %s286 = scalar_lea.sflag [#allocation9], %s285
          %s287 = sand.u32 %s137, 1
          %s288 = smul.addr %s287, 192
          %s289 = scalar_lea.vmem [#allocation10], %s288
          %s290 = smul.u32 8, %s23
          %s292 = ssub.s32 3072, 3072
          %293 = vsyncadd %s286, %s292
          %s294 = smul.addr %s290, 128
          %s295 = scalar_lea.hbm %s4, %s294
          %s297 = sshll.u32 1, 14
          %s298 = sxor.u32 4294967295, %s297
          %s300 = sld [smem:[#allocation0]]
          %s301 = sadd.s32 2, %s300
          %s303 = sshll.u32 7, 26
          %s304 = sxor.u32 4294967295, %s303
          %s305 = sand.u32 0, %s304
          %s306 = sshll.u32 %s301, 26
          %s307 = sor.u32 %s305, %s306
          %s308 = sshll.u32 %s289, 4
          %s309 = int_to_ptr.vmem [resolvable:$true] %s308
          %315 = sst [smem:[#allocation13]] 2048
          %s316 = scalar_lea.smem [#allocation13], 1
          %317 = sst [smem:[%s316]] 1024
          %s318 = scalar_lea.smem [#allocation13], 2
          %319 = sst [smem:[%s318]] 8
          %s320 = scalar_lea.smem [#allocation13], 3
          %321 = sst [smem:[%s320]] 128
          %s322 = scalar_lea.smem [#allocation13], 4
          %323 = sst [smem:[%s322]] 128
          %s324 = scalar_lea.smem [#allocation13], 5
          %325 = sst [smem:[%s324]] 8
          %327 = dma.general %s295, 3072, %s309, %s286, 131072, [#allocation13], %s307, 0
        $region36: #{tpu_custom_call.1} parent=15 // pred_fallthru
          _
      $region16: #{tpu_custom_call.1} parent=5 // pred_fallthru
        _
      %p328 = scmp.le.s32.totalorder 1, %s23
      %p329 = scmp.lt.s32.totalorder %s23, 3
      %p330 = pnand %p328, %p329
      %p331 = pneg %p330
      // Predicated region
      $region37: #{tpu_custom_call.1} parent=5 // pred_check
        _
      $region38: #{tpu_custom_call.1} parent=5 // pred_check_branch
        %333 = sbr.rel (%p330) target = $region40
      $region39: #{tpu_custom_call.1} parent=5 // pred_region
        %s334 = ssub.s32 %s23, 1
        %s335 = sand.u32 %s36, 1
        %s336 = scalar_lea.sflag [#allocation3], %s335
        %s337 = sand.u32 %s36, 1
        %s338 = smul.addr %s337, 64
        %s339 = scalar_lea.vmem [#allocation2], %s338
        // Predicated region
        $region41: #{tpu_custom_call.1} parent=39 // pred_check
          %p340 = pneg %p49
        $region42: #{tpu_custom_call.1} parent=39 // pred_check_branch
          %342 = sbr.rel (%p340) target = $region44
        $region43: #{tpu_custom_call.1} parent=39 // pred_region
          %343 = dma.done %s336, 1024
        $region44: #{tpu_custom_call.1} parent=39 // pred_fallthru
          _
        %s344 = sand.u32 %s28, 1
        %s345 = scalar_lea.sflag [#allocation6], %s344
        %s346 = sand.u32 %s62, 1
        %s347 = smul.addr %s346, 64
        %s348 = scalar_lea.vmem [#allocation5], %s347
        // Predicated region
        $region45: #{tpu_custom_call.1} parent=39 // pred_check
          %p349 = pneg %p75
        $region46: #{tpu_custom_call.1} parent=39 // pred_check_branch
          %351 = sbr.rel (%p349) target = $region48
        $region47: #{tpu_custom_call.1} parent=39 // pred_region
          %352 = dma.done %s345, 1024
        $region48: #{tpu_custom_call.1} parent=39 // pred_fallthru
          _
        %s353 = sand.u32 %s28, 1
        %s354 = scalar_lea.sflag [#allocation6], %s353
        %s355 = sand.u32 %s88, 1
        %s356 = smul.addr %s355, 64
        %s357 = scalar_lea.vmem [#allocation7], %s356
        // Predicated region
        $region49: #{tpu_custom_call.1} parent=39 // pred_check
          %p358 = pneg %p101
        $region50: #{tpu_custom_call.1} parent=39 // pred_check_branch
          %360 = sbr.rel (%p358) target = $region52
        $region51: #{tpu_custom_call.1} parent=39 // pred_region
          %361 = dma.done %s354, 1024
        $region52: #{tpu_custom_call.1} parent=39 // pred_fallthru
          _
        %s362 = sand.u32 %s28, 1
        %s363 = scalar_lea.sflag [#allocation9], %s362
        %s364 = sand.u32 %s114, 1
        %s365 = smul.addr %s364, 64
        %s366 = scalar_lea.vmem [#allocation8], %s365
        // Predicated region
        $region53: #{tpu_custom_call.1} parent=39 // pred_check
          %p367 = pneg %p127
        $region54: #{tpu_custom_call.1} parent=39 // pred_check_branch
          %369 = sbr.rel (%p367) target = $region56
        $region55: #{tpu_custom_call.1} parent=39 // pred_region
          %370 = dma.done %s363, 1024
        $region56: #{tpu_custom_call.1} parent=39 // pred_fallthru
          _
        %s371 = sand.u32 %s28, 1
        %s372 = scalar_lea.sflag [#allocation9], %s371
        %s373 = sand.u32 %s140, 1
        %s374 = smul.addr %s373, 192
        %s375 = scalar_lea.vmem [#allocation10], %s374
        // Predicated region
        $region57: #{tpu_custom_call.1} parent=39 // pred_check
          %p376 = pneg %p153
        $region58: #{tpu_custom_call.1} parent=39 // pred_check_branch
          %378 = sbr.rel (%p376) target = $region60
        $region59: #{tpu_custom_call.1} parent=39 // pred_region
          %379 = dma.done %s372, 3072
        $region60: #{tpu_custom_call.1} parent=39 // pred_fallthru
          _
        %s380 = sand.u32 %s36, 1
        %s381 = scalar_lea.sflag [#allocation3], %s380
        %s382 = sand.u32 %s36, 1
        %s383 = smul.addr %s382, 64
        %s384 = scalar_lea.vmem [#allocation2], %s383
        %p385 = pneg %p49
        %p386 = pneg %p46
        %s387 = sand.u32 %s28, 1
        %s388 = scalar_lea.sflag [#allocation6], %s387
        %s389 = sand.u32 %s62, 1
        %s390 = smul.addr %s389, 64
        %s391 = scalar_lea.vmem [#allocation5], %s390
        %p392 = pneg %p75
        %p393 = pneg %p72
        %s394 = sand.u32 %s28, 1
        %s395 = scalar_lea.sflag [#allocation6], %s394
        %s396 = sand.u32 %s88, 1
        %s397 = smul.addr %s396, 64
        %s398 = scalar_lea.vmem [#allocation7], %s397
        %p399 = pneg %p101
        %p400 = pneg %p98
        %s401 = sand.u32 %s28, 1
        %s402 = scalar_lea.sflag [#allocation9], %s401
        %s403 = sand.u32 %s114, 1
        %s404 = smul.addr %s403, 64
        %s405 = scalar_lea.vmem [#allocation8], %s404
        %p406 = pneg %p127
        %p407 = pneg %p124
        %s408 = sand.u32 %s28, 1
        %s409 = scalar_lea.sflag [#allocation9], %s408
        %s410 = sand.u32 %s140, 1
        %s411 = smul.addr %s410, 192
        %s412 = scalar_lea.vmem [#allocation10], %s411
        %p413 = pneg %p153
        %p414 = pneg %p150
        %p415 = pneg %p179
        %p416 = pneg %p176
        %s417 = sand.u32 %s166, 1
        %s418 = scalar_lea.sflag [#allocation4], %s417
        %s419 = sand.u32 %s166, 1
        %s420 = smul.addr %s419, 192
        %s421 = scalar_lea.vmem [#allocation11], %s420
        %s422 = smul.u32 8, %s28
        %s423 = smul.u32 8, %s28
        %s424 = smul.u32 8, %s28
        %s425 = smul.u32 8, %s28
        %s426 = smul.u32 8, %s28
        %s427 = smul.u32 8, %s28
        %v428 = vld [vmem:[%s339] sm:$0xff]
        %v429 = vld [vmem:[%s339 + $0x8] sm:$0xff]
        %v430 = vld [vmem:[%s339 + $0x10] sm:$0xff]
        %v431 = vld [vmem:[%s339 + $0x18] sm:$0xff]
        %v432 = vld [vmem:[%s339 + $0x20] sm:$0xff]
        %v433 = vld [vmem:[%s339 + $0x28] sm:$0xff]
        %v434 = vld [vmem:[%s339 + $0x30] sm:$0xff]
        %v435 = vld [vmem:[%s339 + $0x38] sm:$0xff]
        %vm436 = vcmp.gt.f32.partialorder %v428, 0.2
        %vm437 = vcmp.gt.f32.partialorder %v429, 0.2
        %vm438 = vcmp.gt.f32.partialorder %v430, 0.2
        %vm439 = vcmp.gt.f32.partialorder %v431, 0.2
        %vm440 = vcmp.gt.f32.partialorder %v432, 0.2
        %vm441 = vcmp.gt.f32.partialorder %v433, 0.2
        %vm442 = vcmp.gt.f32.partialorder %v434, 0.2
        %vm443 = vcmp.gt.f32.partialorder %v435, 0.2
        %vm444 = vcmp.le.f32.partialorder %v428, 0.25
        %vm445 = vcmp.le.f32.partialorder %v429, 0.25
        %vm446 = vcmp.le.f32.partialorder %v430, 0.25
        %vm447 = vcmp.le.f32.partialorder %v431, 0.25
        %vm448 = vcmp.le.f32.partialorder %v432, 0.25
        %vm449 = vcmp.le.f32.partialorder %v433, 0.25
        %vm450 = vcmp.le.f32.partialorder %v434, 0.25
        %vm451 = vcmp.le.f32.partialorder %v435, 0.25
        %vm452 = vmand %vm436, %vm444
        %vm453 = vmand %vm437, %vm445
        %vm454 = vmand %vm438, %vm446
        %vm455 = vmand %vm439, %vm447
        %vm456 = vmand %vm440, %vm448
        %vm457 = vmand %vm441, %vm449
        %vm458 = vmand %vm442, %vm450
        %vm459 = vmand %vm443, %vm451
        %v460 = vsel %vm452, 1, 0
        %v461 = vsel %vm453, 1, 0
        %v462 = vsel %vm454, 1, 0
        %v463 = vsel %vm455, 1, 0
        %v464 = vsel %vm456, 1, 0
        %v465 = vsel %vm457, 1, 0
        %v466 = vsel %vm458, 1, 0
        %v467 = vsel %vm459, 1, 0
        %v468 = vcvt.s32.f32 %v460
        %v469 = vcvt.s32.f32 %v461
        %v470 = vcvt.s32.f32 %v462
        %v471 = vcvt.s32.f32 %v463
        %v472 = vcvt.s32.f32 %v464
        %v473 = vcvt.s32.f32 %v465
        %v474 = vcvt.s32.f32 %v466
        %v475 = vcvt.s32.f32 %v467
        %vm476 = vcmp.gt.f32.partialorder %v428, 0.4
        %vm477 = vcmp.gt.f32.partialorder %v429, 0.4
        %vm478 = vcmp.gt.f32.partialorder %v430, 0.4
        %vm479 = vcmp.gt.f32.partialorder %v431, 0.4
        %vm480 = vcmp.gt.f32.partialorder %v432, 0.4
        %vm481 = vcmp.gt.f32.partialorder %v433, 0.4
        %vm482 = vcmp.gt.f32.partialorder %v434, 0.4
        %vm483 = vcmp.gt.f32.partialorder %v435, 0.4
        %vm484 = vcmp.le.f32.partialorder %v428, 0.5
        %vm485 = vcmp.le.f32.partialorder %v429, 0.5
        %vm486 = vcmp.le.f32.partialorder %v430, 0.5
        %vm487 = vcmp.le.f32.partialorder %v431, 0.5
        %vm488 = vcmp.le.f32.partialorder %v432, 0.5
        %vm489 = vcmp.le.f32.partialorder %v433, 0.5
        %vm490 = vcmp.le.f32.partialorder %v434, 0.5
        %vm491 = vcmp.le.f32.partialorder %v435, 0.5
        %vm492 = vmand %vm476, %vm484
        %vm493 = vmand %vm477, %vm485
        %vm494 = vmand %vm478, %vm486
        %vm495 = vmand %vm479, %vm487
        %vm496 = vmand %vm480, %vm488
        %vm497 = vmand %vm481, %vm489
        %vm498 = vmand %vm482, %vm490
        %vm499 = vmand %vm483, %vm491
        %v500 = vsel %vm492, 1, 0
        %v501 = vsel %vm493, 1, 0
        %v502 = vsel %vm494, 1, 0
        %v503 = vsel %vm495, 1, 0
        %v504 = vsel %vm496, 1, 0
        %v505 = vsel %vm497, 1, 0
        %v506 = vsel %vm498, 1, 0
        %v507 = vsel %vm499, 1, 0
        %v508 = vcvt.s32.f32 %v500
        %v509 = vcvt.s32.f32 %v501
        %v510 = vcvt.s32.f32 %v502
        %v511 = vcvt.s32.f32 %v503
        %v512 = vcvt.s32.f32 %v504
        %v513 = vcvt.s32.f32 %v505
        %v514 = vcvt.s32.f32 %v506
        %v515 = vcvt.s32.f32 %v507
        %vm516 = vcmp.gt.f32.partialorder %v428, 0.6
        %vm517 = vcmp.gt.f32.partialorder %v429, 0.6
        %vm518 = vcmp.gt.f32.partialorder %v430, 0.6
        %vm519 = vcmp.gt.f32.partialorder %v431, 0.6
        %vm520 = vcmp.gt.f32.partialorder %v432, 0.6
        %vm521 = vcmp.gt.f32.partialorder %v433, 0.6
        %vm522 = vcmp.gt.f32.partialorder %v434, 0.6
        %vm523 = vcmp.gt.f32.partialorder %v435, 0.6
        %vm524 = vcmp.le.f32.partialorder %v428, 0.75
        %vm525 = vcmp.le.f32.partialorder %v429, 0.75
        %vm526 = vcmp.le.f32.partialorder %v430, 0.75
        %vm527 = vcmp.le.f32.partialorder %v431, 0.75
        %vm528 = vcmp.le.f32.partialorder %v432, 0.75
        %vm529 = vcmp.le.f32.partialorder %v433, 0.75
        %vm530 = vcmp.le.f32.partialorder %v434, 0.75
        %vm531 = vcmp.le.f32.partialorder %v435, 0.75
        %vm532 = vmand %vm516, %vm524
        %vm533 = vmand %vm517, %vm525
        %vm534 = vmand %vm518, %vm526
        %vm535 = vmand %vm519, %vm527
        %vm536 = vmand %vm520, %vm528
        %vm537 = vmand %vm521, %vm529
        %vm538 = vmand %vm522, %vm530
        %vm539 = vmand %vm523, %vm531
        %v540 = vsel %vm532, 1, 0
        %v541 = vsel %vm533, 1, 0
        %v542 = vsel %vm534, 1, 0
        %v543 = vsel %vm535, 1, 0
        %v544 = vsel %vm536, 1, 0
        %v545 = vsel %vm537, 1, 0
        %v546 = vsel %vm538, 1, 0
        %v547 = vsel %vm539, 1, 0
        %v548 = vcvt.s32.f32 %v540
        %v549 = vcvt.s32.f32 %v541
        %v550 = vcvt.s32.f32 %v542
        %v551 = vcvt.s32.f32 %v543
        %v552 = vcvt.s32.f32 %v544
        %v553 = vcvt.s32.f32 %v545
        %v554 = vcvt.s32.f32 %v546
        %v555 = vcvt.s32.f32 %v547
        %vm556 = vcmp.gt.f32.partialorder %v428, 0.8
        %vm557 = vcmp.gt.f32.partialorder %v429, 0.8
        %vm558 = vcmp.gt.f32.partialorder %v430, 0.8
        %vm559 = vcmp.gt.f32.partialorder %v431, 0.8
        %vm560 = vcmp.gt.f32.partialorder %v432, 0.8
        %vm561 = vcmp.gt.f32.partialorder %v433, 0.8
        %vm562 = vcmp.gt.f32.partialorder %v434, 0.8
        %vm563 = vcmp.gt.f32.partialorder %v435, 0.8
        %vm564 = vcmp.le.f32.partialorder %v428, 1.0
        %vm565 = vcmp.le.f32.partialorder %v429, 1.0
        %vm566 = vcmp.le.f32.partialorder %v430, 1.0
        %vm567 = vcmp.le.f32.partialorder %v431, 1.0
        %vm568 = vcmp.le.f32.partialorder %v432, 1.0
        %vm569 = vcmp.le.f32.partialorder %v433, 1.0
        %vm570 = vcmp.le.f32.partialorder %v434, 1.0
        %vm571 = vcmp.le.f32.partialorder %v435, 1.0
        %vm572 = vmand %vm556, %vm564
        %vm573 = vmand %vm557, %vm565
        %vm574 = vmand %vm558, %vm566
        %vm575 = vmand %vm559, %vm567
        %vm576 = vmand %vm560, %vm568
        %vm577 = vmand %vm561, %vm569
        %vm578 = vmand %vm562, %vm570
        %vm579 = vmand %vm563, %vm571
        %v580 = vsel %vm572, 1, 0
        %v581 = vsel %vm573, 1, 0
        %v582 = vsel %vm574, 1, 0
        %v583 = vsel %vm575, 1, 0
        %v584 = vsel %vm576, 1, 0
        %v585 = vsel %vm577, 1, 0
        %v586 = vsel %vm578, 1, 0
        %v587 = vsel %vm579, 1, 0
        %v588 = vcvt.s32.f32 %v580
        %v589 = vcvt.s32.f32 %v581
        %v590 = vcvt.s32.f32 %v582
        %v591 = vcvt.s32.f32 %v583
        %v592 = vcvt.s32.f32 %v584
        %v593 = vcvt.s32.f32 %v585
        %v594 = vcvt.s32.f32 %v586
        %v595 = vcvt.s32.f32 %v587
        %v596 = vadd.f32 %v508, %v548
        %v597 = vadd.f32 %v509, %v549
        %v598 = vadd.f32 %v510, %v550
        %v599 = vadd.f32 %v511, %v551
        %v600 = vadd.f32 %v512, %v552
        %v601 = vadd.f32 %v513, %v553
        %v602 = vadd.f32 %v514, %v554
        %v603 = vadd.f32 %v515, %v555
        %v604 = vmul.f32 %v468, 0.25
        %v605 = vmul.f32 %v469, 0.25
        %v606 = vmul.f32 %v470, 0.25
        %v607 = vmul.f32 %v471, 0.25
        %v608 = vmul.f32 %v472, 0.25
        %v609 = vmul.f32 %v473, 0.25
        %v610 = vmul.f32 %v474, 0.25
        %v611 = vmul.f32 %v475, 0.25
        %v612 = vmul.f32 %v508, 0.5
        %v613 = vmul.f32 %v509, 0.5
        %v614 = vmul.f32 %v510, 0.5
        %v615 = vmul.f32 %v511, 0.5
        %v616 = vmul.f32 %v512, 0.5
        %v617 = vmul.f32 %v513, 0.5
        %v618 = vmul.f32 %v514, 0.5
        %v619 = vmul.f32 %v515, 0.5
        %v620 = vadd.f32 %v604, %v612
        %v621 = vadd.f32 %v605, %v613
        %v622 = vadd.f32 %v606, %v614
        %v623 = vadd.f32 %v607, %v615
        %v624 = vadd.f32 %v608, %v616
        %v625 = vadd.f32 %v609, %v617
        %v626 = vadd.f32 %v610, %v618
        %v627 = vadd.f32 %v611, %v619
        %v628 = vmul.f32 %v548, 0.75
        %v629 = vmul.f32 %v549, 0.75
        %v630 = vmul.f32 %v550, 0.75
        %v631 = vmul.f32 %v551, 0.75
        %v632 = vmul.f32 %v552, 0.75
        %v633 = vmul.f32 %v553, 0.75
        %v634 = vmul.f32 %v554, 0.75
        %v635 = vmul.f32 %v555, 0.75
        %v636 = vadd.f32 %v620, %v628
        %v637 = vadd.f32 %v621, %v629
        %v638 = vadd.f32 %v622, %v630
        %v639 = vadd.f32 %v623, %v631
        %v640 = vadd.f32 %v624, %v632
        %v641 = vadd.f32 %v625, %v633
        %v642 = vadd.f32 %v626, %v634
        %v643 = vadd.f32 %v627, %v635
        %v644 = vadd.f32 %v636, %v588
        %v645 = vadd.f32 %v637, %v589
        %v646 = vadd.f32 %v638, %v590
        %v647 = vadd.f32 %v639, %v591
        %v648 = vadd.f32 %v640, %v592
        %v649 = vadd.f32 %v641, %v593
        %v650 = vadd.f32 %v642, %v594
        %v651 = vadd.f32 %v643, %v595
        %vm652 = vcmp.gt.f32.partialorder %v644, 0.0
        %vm653 = vcmp.gt.f32.partialorder %v645, 0.0
        %vm654 = vcmp.gt.f32.partialorder %v646, 0.0
        %vm655 = vcmp.gt.f32.partialorder %v647, 0.0
        %vm656 = vcmp.gt.f32.partialorder %v648, 0.0
        %vm657 = vcmp.gt.f32.partialorder %v649, 0.0
        %vm658 = vcmp.gt.f32.partialorder %v650, 0.0
        %vm659 = vcmp.gt.f32.partialorder %v651, 0.0
        %v660 = vld [vmem:[%s348] sm:$0xff]
        %v661 = vld [vmem:[%s348 + $0x8] sm:$0xff]
        %v662 = vld [vmem:[%s348 + $0x10] sm:$0xff]
        %v663 = vld [vmem:[%s348 + $0x18] sm:$0xff]
        %v664 = vld [vmem:[%s348 + $0x20] sm:$0xff]
        %v665 = vld [vmem:[%s348 + $0x28] sm:$0xff]
        %v666 = vld [vmem:[%s348 + $0x30] sm:$0xff]
        %v667 = vld [vmem:[%s348 + $0x38] sm:$0xff]
        %v668 = vmul.f32 %v644, %v660
        %v669 = vmul.f32 %v645, %v661
        %v670 = vmul.f32 %v646, %v662
        %v671 = vmul.f32 %v647, %v663
        %v672 = vmul.f32 %v648, %v664
        %v673 = vmul.f32 %v649, %v665
        %v674 = vmul.f32 %v650, %v666
        %v675 = vmul.f32 %v651, %v667
        %vm676 = vcmp.gt.f32.partialorder %v428, 0.3
        %vm677 = vcmp.gt.f32.partialorder %v429, 0.3
        %vm678 = vcmp.gt.f32.partialorder %v430, 0.3
        %vm679 = vcmp.gt.f32.partialorder %v431, 0.3
        %vm680 = vcmp.gt.f32.partialorder %v432, 0.3
        %vm681 = vcmp.gt.f32.partialorder %v433, 0.3
        %vm682 = vcmp.gt.f32.partialorder %v434, 0.3
        %vm683 = vcmp.gt.f32.partialorder %v435, 0.3
        %v684 = vld [vmem:[%s357] sm:$0xff]
        %v685 = vld [vmem:[%s357 + $0x8] sm:$0xff]
        %v686 = vld [vmem:[%s357 + $0x10] sm:$0xff]
        %v687 = vld [vmem:[%s357 + $0x18] sm:$0xff]
        %v688 = vld [vmem:[%s357 + $0x20] sm:$0xff]
        %v689 = vld [vmem:[%s357 + $0x28] sm:$0xff]
        %v690 = vld [vmem:[%s357 + $0x30] sm:$0xff]
        %v691 = vld [vmem:[%s357 + $0x38] sm:$0xff]
        %v692 = vadd.f32 %v684, 1.0
        %v693 = vadd.f32 %v685, 1.0
        %v694 = vadd.f32 %v686, 1.0
        %v695 = vadd.f32 %v687, 1.0
        %v696 = vadd.f32 %v688, 1.0
        %v697 = vadd.f32 %v689, 1.0
        %v698 = vadd.f32 %v690, 1.0
        %v699 = vadd.f32 %v691, 1.0
        %v700 = vsel %vm676, %v692, 1.0
        %v701 = vsel %vm677, %v693, 1.0
        %v702 = vsel %vm678, %v694, 1.0
        %v703 = vsel %vm679, %v695, 1.0
        %v704 = vsel %vm680, %v696, 1.0
        %v705 = vsel %vm681, %v697, 1.0
        %v706 = vsel %vm682, %v698, 1.0
        %v707 = vsel %vm683, %v699, 1.0
        %v708 = vld [vmem:[%s366] sm:$0xff]
        %v709 = vld [vmem:[%s366 + $0x8] sm:$0xff]
        %v710 = vld [vmem:[%s366 + $0x10] sm:$0xff]
        %v711 = vld [vmem:[%s366 + $0x18] sm:$0xff]
        %v712 = vld [vmem:[%s366 + $0x20] sm:$0xff]
        %v713 = vld [vmem:[%s366 + $0x28] sm:$0xff]
        %v714 = vld [vmem:[%s366 + $0x30] sm:$0xff]
        %v715 = vld [vmem:[%s366 + $0x38] sm:$0xff]
        %v716 = vld [vmem:[%s375] sm:$0xff]
        %v717 = vld [vmem:[%s375 + $0x8] sm:$0xff]
        %v718 = vld [vmem:[%s375 + $0x10] sm:$0xff]
        %v719 = vld [vmem:[%s375 + $0x18] sm:$0xff]
        %v720 = vld [vmem:[%s375 + $0x20] sm:$0xff]
        %v721 = vld [vmem:[%s375 + $0x28] sm:$0xff]
        %v722 = vld [vmem:[%s375 + $0x30] sm:$0xff]
        %v723 = vld [vmem:[%s375 + $0x38] sm:$0xff]
        %v724 = vmul.f32 %v468, 0.65
        %v725 = vmul.f32 %v469, 0.65
        %v726 = vmul.f32 %v470, 0.65
        %v727 = vmul.f32 %v471, 0.65
        %v728 = vmul.f32 %v472, 0.65
        %v729 = vmul.f32 %v473, 0.65
        %v730 = vmul.f32 %v474, 0.65
        %v731 = vmul.f32 %v475, 0.65
        %v732 = vmul.f32 %v596, 0.35
        %v733 = vmul.f32 %v597, 0.35
        %v734 = vmul.f32 %v598, 0.35
        %v735 = vmul.f32 %v599, 0.35
        %v736 = vmul.f32 %v600, 0.35
        %v737 = vmul.f32 %v601, 0.35
        %v738 = vmul.f32 %v602, 0.35
        %v739 = vmul.f32 %v603, 0.35
        %v740 = vadd.f32 %v724, %v732
        %v741 = vadd.f32 %v725, %v733
        %v742 = vadd.f32 %v726, %v734
        %v743 = vadd.f32 %v727, %v735
        %v744 = vadd.f32 %v728, %v736
        %v745 = vadd.f32 %v729, %v737
        %v746 = vadd.f32 %v730, %v738
        %v747 = vadd.f32 %v731, %v739
        %v748 = vmul.f32 %v588, 0.15
        %v749 = vmul.f32 %v589, 0.15
        %v750 = vmul.f32 %v590, 0.15
        %v751 = vmul.f32 %v591, 0.15
        %v752 = vmul.f32 %v592, 0.15
        %v753 = vmul.f32 %v593, 0.15
        %v754 = vmul.f32 %v594, 0.15
        %v755 = vmul.f32 %v595, 0.15
        %v756 = vadd.f32 %v740, %v748
        %v757 = vadd.f32 %v741, %v749
        %v758 = vadd.f32 %v742, %v750
        %v759 = vadd.f32 %v743, %v751
        %v760 = vadd.f32 %v744, %v752
        %v761 = vadd.f32 %v745, %v753
        %v762 = vadd.f32 %v746, %v754
        %v763 = vadd.f32 %v747, %v755
        %v764 = vsub.f32 %v756, %v716
        %v765 = vsub.f32 %v757, %v717
        %v766 = vsub.f32 %v758, %v718
        %v767 = vsub.f32 %v759, %v719
        %v768 = vsub.f32 %v760, %v720
        %v769 = vsub.f32 %v761, %v721
        %v770 = vsub.f32 %v762, %v722
        %v771 = vsub.f32 %v763, %v723
        %v772 = vmul.f32 %v668, %v764
        %v773 = vmul.f32 %v669, %v765
        %v774 = vmul.f32 %v670, %v766
        %v775 = vmul.f32 %v671, %v767
        %v776 = vmul.f32 %v672, %v768
        %v777 = vmul.f32 %v673, %v769
        %v778 = vmul.f32 %v674, %v770
        %v779 = vmul.f32 %v675, %v771
        %v780 = vadd.f32 %v716, %v772
        %v781 = vadd.f32 %v717, %v773
        %v782 = vadd.f32 %v718, %v774
        %v783 = vadd.f32 %v719, %v775
        %v784 = vadd.f32 %v720, %v776
        %v785 = vadd.f32 %v721, %v777
        %v786 = vadd.f32 %v722, %v778
        %v787 = vadd.f32 %v723, %v779
        %v788 = vsel %vm652, %v780, %v716
        %v789 = vsel %vm653, %v781, %v717
        %v790 = vsel %vm654, %v782, %v718
        %v791 = vsel %vm655, %v783, %v719
        %v792 = vsel %vm656, %v784, %v720
        %v793 = vsel %vm657, %v785, %v721
        %v794 = vsel %vm658, %v786, %v722
        %v795 = vsel %vm659, %v787, %v723
        %v796 = vsel %vm556, 0.05, %v788
        %v797 = vsel %vm557, 0.05, %v789
        %v798 = vsel %vm558, 0.05, %v790
        %v799 = vsel %vm559, 0.05, %v791
        %v800 = vsel %vm560, 0.05, %v792
        %v801 = vsel %vm561, 0.05, %v793
        %v802 = vsel %vm562, 0.05, %v794
        %v803 = vsel %vm563, 0.05, %v795
        %v804 = vmul.f32 %v796, %v700
        %v805 = vmul.f32 %v797, %v701
        %v806 = vmul.f32 %v798, %v702
        %v807 = vmul.f32 %v799, %v703
        %v808 = vmul.f32 %v800, %v704
        %v809 = vmul.f32 %v801, %v705
        %v810 = vmul.f32 %v802, %v706
        %v811 = vmul.f32 %v803, %v707
        %v812 = vmax.f32 %v804, 0.0
        %v813 = vmax.f32 %v805, 0.0
        %v814 = vmax.f32 %v806, 0.0
        %v815 = vmax.f32 %v807, 0.0
        %v816 = vmax.f32 %v808, 0.0
        %v817 = vmax.f32 %v809, 0.0
        %v818 = vmax.f32 %v810, 0.0
        %v819 = vmax.f32 %v811, 0.0
        %v820 = vmin.f32 %v812, 1.0
        %v821 = vmin.f32 %v813, 1.0
        %v822 = vmin.f32 %v814, 1.0
        %v823 = vmin.f32 %v815, 1.0
        %v824 = vmin.f32 %v816, 1.0
        %v825 = vmin.f32 %v817, 1.0
        %v826 = vmin.f32 %v818, 1.0
        %v827 = vmin.f32 %v819, 1.0
        %v828 = vadd.f32 %v708, 1.0
        %v829 = vadd.f32 %v709, 1.0
        %v830 = vadd.f32 %v710, 1.0
        %v831 = vadd.f32 %v711, 1.0
        %v832 = vadd.f32 %v712, 1.0
        %v833 = vadd.f32 %v713, 1.0
        %v834 = vadd.f32 %v714, 1.0
        %v835 = vadd.f32 %v715, 1.0
        %v836 = vmul.f32 %v820, %v828
        %v837 = vmul.f32 %v821, %v829
        %v838 = vmul.f32 %v822, %v830
        %v839 = vmul.f32 %v823, %v831
        %v840 = vmul.f32 %v824, %v832
        %v841 = vmul.f32 %v825, %v833
        %v842 = vmul.f32 %v826, %v834
        %v843 = vmul.f32 %v827, %v835
        %v844 = vmax.f32 %v836, 0.0
        %v845 = vmax.f32 %v837, 0.0
        %v846 = vmax.f32 %v838, 0.0
        %v847 = vmax.f32 %v839, 0.0
        %v848 = vmax.f32 %v840, 0.0
        %v849 = vmax.f32 %v841, 0.0
        %v850 = vmax.f32 %v842, 0.0
        %v851 = vmax.f32 %v843, 0.0
        %v852 = vmin.f32 %v844, 1.0
        %v853 = vmin.f32 %v845, 1.0
        %v854 = vmin.f32 %v846, 1.0
        %v855 = vmin.f32 %v847, 1.0
        %v856 = vmin.f32 %v848, 1.0
        %v857 = vmin.f32 %v849, 1.0
        %v858 = vmin.f32 %v850, 1.0
        %v859 = vmin.f32 %v851, 1.0
        %860 = vst [vmem:[%s421] sm:$0xff] %v852
        %861 = vst [vmem:[%s421 + $0x8] sm:$0xff] %v853
        %862 = vst [vmem:[%s421 + $0x10] sm:$0xff] %v854
        %863 = vst [vmem:[%s421 + $0x18] sm:$0xff] %v855
        %864 = vst [vmem:[%s421 + $0x20] sm:$0xff] %v856
        %865 = vst [vmem:[%s421 + $0x28] sm:$0xff] %v857
        %866 = vst [vmem:[%s421 + $0x30] sm:$0xff] %v858
        %867 = vst [vmem:[%s421 + $0x38] sm:$0xff] %v859
        %s868 = scalar_lea.vmem %s375, 64 [#allocation10]
        %v869 = vld [vmem:[%s868] sm:$0xff]
        %v870 = vld [vmem:[%s868 + $0x8] sm:$0xff]
        %v871 = vld [vmem:[%s868 + $0x10] sm:$0xff]
        %v872 = vld [vmem:[%s868 + $0x18] sm:$0xff]
        %v873 = vld [vmem:[%s868 + $0x20] sm:$0xff]
        %v874 = vld [vmem:[%s868 + $0x28] sm:$0xff]
        %v875 = vld [vmem:[%s868 + $0x30] sm:$0xff]
        %v876 = vld [vmem:[%s868 + $0x38] sm:$0xff]
        %v877 = vmul.f32 %v468, 0.4
        %v878 = vmul.f32 %v469, 0.4
        %v879 = vmul.f32 %v470, 0.4
        %v880 = vmul.f32 %v471, 0.4
        %v881 = vmul.f32 %v472, 0.4
        %v882 = vmul.f32 %v473, 0.4
        %v883 = vmul.f32 %v474, 0.4
        %v884 = vmul.f32 %v475, 0.4
        %v885 = vmul.f32 %v596, 0.2
        %v886 = vmul.f32 %v597, 0.2
        %v887 = vmul.f32 %v598, 0.2
        %v888 = vmul.f32 %v599, 0.2
        %v889 = vmul.f32 %v600, 0.2
        %v890 = vmul.f32 %v601, 0.2
        %v891 = vmul.f32 %v602, 0.2
        %v892 = vmul.f32 %v603, 0.2
        %v893 = vadd.f32 %v877, %v885
        %v894 = vadd.f32 %v878, %v886
        %v895 = vadd.f32 %v879, %v887
        %v896 = vadd.f32 %v880, %v888
        %v897 = vadd.f32 %v881, %v889
        %v898 = vadd.f32 %v882, %v890
        %v899 = vadd.f32 %v883, %v891
        %v900 = vadd.f32 %v884, %v892
        %v901 = vmul.f32 %v588, 0.1
        %v902 = vmul.f32 %v589, 0.1
        %v903 = vmul.f32 %v590, 0.1
        %v904 = vmul.f32 %v591, 0.1
        %v905 = vmul.f32 %v592, 0.1
        %v906 = vmul.f32 %v593, 0.1
        %v907 = vmul.f32 %v594, 0.1
        %v908 = vmul.f32 %v595, 0.1
        %v909 = vadd.f32 %v893, %v901
        %v910 = vadd.f32 %v894, %v902
        %v911 = vadd.f32 %v895, %v903
        %v912 = vadd.f32 %v896, %v904
        %v913 = vadd.f32 %v897, %v905
        %v914 = vadd.f32 %v898, %v906
        %v915 = vadd.f32 %v899, %v907
        %v916 = vadd.f32 %v900, %v908
        %v917 = vsub.f32 %v909, %v869
        %v918 = vsub.f32 %v910, %v870
        %v919 = vsub.f32 %v911, %v871
        %v920 = vsub.f32 %v912, %v872
        %v921 = vsub.f32 %v913, %v873
        %v922 = vsub.f32 %v914, %v874
        %v923 = vsub.f32 %v915, %v875
        %v924 = vsub.f32 %v916, %v876
        %v925 = vmul.f32 %v668, %v917
        %v926 = vmul.f32 %v669, %v918
        %v927 = vmul.f32 %v670, %v919
        %v928 = vmul.f32 %v671, %v920
        %v929 = vmul.f32 %v672, %v921
        %v930 = vmul.f32 %v673, %v922
        %v931 = vmul.f32 %v674, %v923
        %v932 = vmul.f32 %v675, %v924
        %v933 = vadd.f32 %v869, %v925
        %v934 = vadd.f32 %v870, %v926
        %v935 = vadd.f32 %v871, %v927
        %v936 = vadd.f32 %v872, %v928
        %v937 = vadd.f32 %v873, %v929
        %v938 = vadd.f32 %v874, %v930
        %v939 = vadd.f32 %v875, %v931
        %v940 = vadd.f32 %v876, %v932
        %v941 = vsel %vm652, %v933, %v869
        %v942 = vsel %vm653, %v934, %v870
        %v943 = vsel %vm654, %v935, %v871
        %v944 = vsel %vm655, %v936, %v872
        %v945 = vsel %vm656, %v937, %v873
        %v946 = vsel %vm657, %v938, %v874
        %v947 = vsel %vm658, %v939, %v875
        %v948 = vsel %vm659, %v940, %v876
        %v949 = vsel %vm556, 0.05, %v941
        %v950 = vsel %vm557, 0.05, %v942
        %v951 = vsel %vm558, 0.05, %v943
        %v952 = vsel %vm559, 0.05, %v944
        %v953 = vsel %vm560, 0.05, %v945
        %v954 = vsel %vm561, 0.05, %v946
        %v955 = vsel %vm562, 0.05, %v947
        %v956 = vsel %vm563, 0.05, %v948
        %v957 = vmul.f32 %v949, %v700
        %v958 = vmul.f32 %v950, %v701
        %v959 = vmul.f32 %v951, %v702
        %v960 = vmul.f32 %v952, %v703
        %v961 = vmul.f32 %v953, %v704
        %v962 = vmul.f32 %v954, %v705
        %v963 = vmul.f32 %v955, %v706
        %v964 = vmul.f32 %v956, %v707
        %v965 = vmax.f32 %v957, 0.0
        %v966 = vmax.f32 %v958, 0.0
        %v967 = vmax.f32 %v959, 0.0
        %v968 = vmax.f32 %v960, 0.0
        %v969 = vmax.f32 %v961, 0.0
        %v970 = vmax.f32 %v962, 0.0
        %v971 = vmax.f32 %v963, 0.0
        %v972 = vmax.f32 %v964, 0.0
        %v973 = vmin.f32 %v965, 1.0
        %v974 = vmin.f32 %v966, 1.0
        %v975 = vmin.f32 %v967, 1.0
        %v976 = vmin.f32 %v968, 1.0
        %v977 = vmin.f32 %v969, 1.0
        %v978 = vmin.f32 %v970, 1.0
        %v979 = vmin.f32 %v971, 1.0
        %v980 = vmin.f32 %v972, 1.0
        %v981 = vmul.f32 %v708, 0.3
        %v982 = vmul.f32 %v709, 0.3
        %v983 = vmul.f32 %v710, 0.3
        %v984 = vmul.f32 %v711, 0.3
        %v985 = vmul.f32 %v712, 0.3
        %v986 = vmul.f32 %v713, 0.3
        %v987 = vmul.f32 %v714, 0.3
        %v988 = vmul.f32 %v715, 0.3
        %v989 = vadd.f32 %v981, 1.0
        %v990 = vadd.f32 %v982, 1.0
        %v991 = vadd.f32 %v983, 1.0
        %v992 = vadd.f32 %v984, 1.0
        %v993 = vadd.f32 %v985, 1.0
        %v994 = vadd.f32 %v986, 1.0
        %v995 = vadd.f32 %v987, 1.0
        %v996 = vadd.f32 %v988, 1.0
        %v997 = vmul.f32 %v973, %v989
        %v998 = vmul.f32 %v974, %v990
        %v999 = vmul.f32 %v975, %v991
        %v1000 = vmul.f32 %v976, %v992
        %v1001 = vmul.f32 %v977, %v993
        %v1002 = vmul.f32 %v978, %v994
        %v1003 = vmul.f32 %v979, %v995
        %v1004 = vmul.f32 %v980, %v996
        %v1005 = vmax.f32 %v997, 0.0
        %v1006 = vmax.f32 %v998, 0.0
        %v1007 = vmax.f32 %v999, 0.0
        %v1008 = vmax.f32 %v1000, 0.0
        %v1009 = vmax.f32 %v1001, 0.0
        %v1010 = vmax.f32 %v1002, 0.0
        %v1011 = vmax.f32 %v1003, 0.0
        %v1012 = vmax.f32 %v1004, 0.0
        %v1013 = vmin.f32 %v1005, 1.0
        %v1014 = vmin.f32 %v1006, 1.0
        %v1015 = vmin.f32 %v1007, 1.0
        %v1016 = vmin.f32 %v1008, 1.0
        %v1017 = vmin.f32 %v1009, 1.0
        %v1018 = vmin.f32 %v1010, 1.0
        %v1019 = vmin.f32 %v1011, 1.0
        %v1020 = vmin.f32 %v1012, 1.0
        %s1021 = scalar_lea.vmem %s421, 64 [#allocation11]
        %1022 = vst [vmem:[%s1021] sm:$0xff] %v1013
        %1023 = vst [vmem:[%s1021 + $0x8] sm:$0xff] %v1014
        %1024 = vst [vmem:[%s1021 + $0x10] sm:$0xff] %v1015
        %1025 = vst [vmem:[%s1021 + $0x18] sm:$0xff] %v1016
        %1026 = vst [vmem:[%s1021 + $0x20] sm:$0xff] %v1017
        %1027 = vst [vmem:[%s1021 + $0x28] sm:$0xff] %v1018
        %1028 = vst [vmem:[%s1021 + $0x30] sm:$0xff] %v1019
        %1029 = vst [vmem:[%s1021 + $0x38] sm:$0xff] %v1020
        %s1030 = scalar_lea.vmem %s375, 128 [#allocation10]
        %v1031 = vld [vmem:[%s1030] sm:$0xff]
        %v1032 = vld [vmem:[%s1030 + $0x8] sm:$0xff]
        %v1033 = vld [vmem:[%s1030 + $0x10] sm:$0xff]
        %v1034 = vld [vmem:[%s1030 + $0x18] sm:$0xff]
        %v1035 = vld [vmem:[%s1030 + $0x20] sm:$0xff]
        %v1036 = vld [vmem:[%s1030 + $0x28] sm:$0xff]
        %v1037 = vld [vmem:[%s1030 + $0x30] sm:$0xff]
        %v1038 = vld [vmem:[%s1030 + $0x38] sm:$0xff]
        %v1039 = vmul.f32 %v596, 0.15
        %v1040 = vmul.f32 %v597, 0.15
        %v1041 = vmul.f32 %v598, 0.15
        %v1042 = vmul.f32 %v599, 0.15
        %v1043 = vmul.f32 %v600, 0.15
        %v1044 = vmul.f32 %v601, 0.15
        %v1045 = vmul.f32 %v602, 0.15
        %v1046 = vmul.f32 %v603, 0.15
        %v1047 = vadd.f32 %v604, %v1039
        %v1048 = vadd.f32 %v605, %v1040
        %v1049 = vadd.f32 %v606, %v1041
        %v1050 = vadd.f32 %v607, %v1042
        %v1051 = vadd.f32 %v608, %v1043
        %v1052 = vadd.f32 %v609, %v1044
        %v1053 = vadd.f32 %v610, %v1045
        %v1054 = vadd.f32 %v611, %v1046
        %v1055 = vadd.f32 %v1047, %v901
        %v1056 = vadd.f32 %v1048, %v902
        %v1057 = vadd.f32 %v1049, %v903
        %v1058 = vadd.f32 %v1050, %v904
        %v1059 = vadd.f32 %v1051, %v905
        %v1060 = vadd.f32 %v1052, %v906
        %v1061 = vadd.f32 %v1053, %v907
        %v1062 = vadd.f32 %v1054, %v908
        %v1063 = vsub.f32 %v1055, %v1031
        %v1064 = vsub.f32 %v1056, %v1032
        %v1065 = vsub.f32 %v1057, %v1033
        %v1066 = vsub.f32 %v1058, %v1034
        %v1067 = vsub.f32 %v1059, %v1035
        %v1068 = vsub.f32 %v1060, %v1036
        %v1069 = vsub.f32 %v1061, %v1037
        %v1070 = vsub.f32 %v1062, %v1038
        %v1071 = vmul.f32 %v668, %v1063
        %v1072 = vmul.f32 %v669, %v1064
        %v1073 = vmul.f32 %v670, %v1065
        %v1074 = vmul.f32 %v671, %v1066
        %v1075 = vmul.f32 %v672, %v1067
        %v1076 = vmul.f32 %v673, %v1068
        %v1077 = vmul.f32 %v674, %v1069
        %v1078 = vmul.f32 %v675, %v1070
        %v1079 = vadd.f32 %v1031, %v1071
        %v1080 = vadd.f32 %v1032, %v1072
        %v1081 = vadd.f32 %v1033, %v1073
        %v1082 = vadd.f32 %v1034, %v1074
        %v1083 = vadd.f32 %v1035, %v1075
        %v1084 = vadd.f32 %v1036, %v1076
        %v1085 = vadd.f32 %v1037, %v1077
        %v1086 = vadd.f32 %v1038, %v1078
        %v1087 = vsel %vm652, %v1079, %v1031
        %v1088 = vsel %vm653, %v1080, %v1032
        %v1089 = vsel %vm654, %v1081, %v1033
        %v1090 = vsel %vm655, %v1082, %v1034
        %v1091 = vsel %vm656, %v1083, %v1035
        %v1092 = vsel %vm657, %v1084, %v1036
        %v1093 = vsel %vm658, %v1085, %v1037
        %v1094 = vsel %vm659, %v1086, %v1038
        %v1095 = vsel %vm556, 0.05, %v1087
        %v1096 = vsel %vm557, 0.05, %v1088
        %v1097 = vsel %vm558, 0.05, %v1089
        %v1098 = vsel %vm559, 0.05, %v1090
        %v1099 = vsel %vm560, 0.05, %v1091
        %v1100 = vsel %vm561, 0.05, %v1092
        %v1101 = vsel %vm562, 0.05, %v1093
        %v1102 = vsel %vm563, 0.05, %v1094
        %v1103 = vmul.f32 %v1095, %v700
        %v1104 = vmul.f32 %v1096, %v701
        %v1105 = vmul.f32 %v1097, %v702
        %v1106 = vmul.f32 %v1098, %v703
        %v1107 = vmul.f32 %v1099, %v704
        %v1108 = vmul.f32 %v1100, %v705
        %v1109 = vmul.f32 %v1101, %v706
        %v1110 = vmul.f32 %v1102, %v707
        %v1111 = vmax.f32 %v1103, 0.0
        %v1112 = vmax.f32 %v1104, 0.0
        %v1113 = vmax.f32 %v1105, 0.0
        %v1114 = vmax.f32 %v1106, 0.0
        %v1115 = vmax.f32 %v1107, 0.0
        %v1116 = vmax.f32 %v1108, 0.0
        %v1117 = vmax.f32 %v1109, 0.0
        %v1118 = vmax.f32 %v1110, 0.0
        %v1119 = vmin.f32 %v1111, 1.0
        %v1120 = vmin.f32 %v1112, 1.0
        %v1121 = vmin.f32 %v1113, 1.0
        %v1122 = vmin.f32 %v1114, 1.0
        %v1123 = vmin.f32 %v1115, 1.0
        %v1124 = vmin.f32 %v1116, 1.0
        %v1125 = vmin.f32 %v1117, 1.0
        %v1126 = vmin.f32 %v1118, 1.0
        %v1127 = vmul.f32 %v708, -0.2
        %v1128 = vmul.f32 %v709, -0.2
        %v1129 = vmul.f32 %v710, -0.2
        %v1130 = vmul.f32 %v711, -0.2
        %v1131 = vmul.f32 %v712, -0.2
        %v1132 = vmul.f32 %v713, -0.2
        %v1133 = vmul.f32 %v714, -0.2
        %v1134 = vmul.f32 %v715, -0.2
        %v1135 = vadd.f32 %v1127, 1.0
        %v1136 = vadd.f32 %v1128, 1.0
        %v1137 = vadd.f32 %v1129, 1.0
        %v1138 = vadd.f32 %v1130, 1.0
        %v1139 = vadd.f32 %v1131, 1.0
        %v1140 = vadd.f32 %v1132, 1.0
        %v1141 = vadd.f32 %v1133, 1.0
        %v1142 = vadd.f32 %v1134, 1.0
        %v1143 = vmul.f32 %v1119, %v1135
        %v1144 = vmul.f32 %v1120, %v1136
        %v1145 = vmul.f32 %v1121, %v1137
        %v1146 = vmul.f32 %v1122, %v1138
        %v1147 = vmul.f32 %v1123, %v1139
        %v1148 = vmul.f32 %v1124, %v1140
        %v1149 = vmul.f32 %v1125, %v1141
        %v1150 = vmul.f32 %v1126, %v1142
        %v1151 = vmax.f32 %v1143, 0.0
        %v1152 = vmax.f32 %v1144, 0.0
        %v1153 = vmax.f32 %v1145, 0.0
        %v1154 = vmax.f32 %v1146, 0.0
        %v1155 = vmax.f32 %v1147, 0.0
        %v1156 = vmax.f32 %v1148, 0.0
        %v1157 = vmax.f32 %v1149, 0.0
        %v1158 = vmax.f32 %v1150, 0.0
        %v1159 = vmin.f32 %v1151, 1.0
        %v1160 = vmin.f32 %v1152, 1.0
        %v1161 = vmin.f32 %v1153, 1.0
        %v1162 = vmin.f32 %v1154, 1.0
        %v1163 = vmin.f32 %v1155, 1.0
        %v1164 = vmin.f32 %v1156, 1.0
        %v1165 = vmin.f32 %v1157, 1.0
        %v1166 = vmin.f32 %v1158, 1.0
        %s1167 = scalar_lea.vmem %s421, 128 [#allocation11]
        %1168 = vst [vmem:[%s1167] sm:$0xff] %v1159
        %1169 = vst [vmem:[%s1167 + $0x8] sm:$0xff] %v1160
        %1170 = vst [vmem:[%s1167 + $0x10] sm:$0xff] %v1161
        %1171 = vst [vmem:[%s1167 + $0x18] sm:$0xff] %v1162
        %1172 = vst [vmem:[%s1167 + $0x20] sm:$0xff] %v1163
        %1173 = vst [vmem:[%s1167 + $0x28] sm:$0xff] %v1164
        %1174 = vst [vmem:[%s1167 + $0x30] sm:$0xff] %v1165
        %1175 = vst [vmem:[%s1167 + $0x38] sm:$0xff] %v1166
        %s1176 = sand.u32 %s166, 1
        %s1177 = scalar_lea.sflag [#allocation4], %s1176
        %s1178 = sand.u32 %s166, 1
        %s1179 = smul.addr %s1178, 192
        %s1180 = scalar_lea.vmem [#allocation11], %s1179
        // Predicated region
        $region61: #{tpu_custom_call.1} parent=39 // pred_check
          %p1181 = pneg %p176
        $region62: #{tpu_custom_call.1} parent=39 // pred_check_branch
          %1183 = sbr.rel (%p1181) target = $region64
        $region63: #{tpu_custom_call.1} parent=39 // pred_region
          #allocation15 [shape = 'u32[6]{0}', space=smem, size = 0x18, scoped, tag = 'DMA stride descriptor']
          %s1184 = smul.u32 8, %s28
          %s1186 = ssub.s32 3072, 3072
          %1187 = vsyncadd %s1177, %s1186
          %s1188 = smul.addr %s1184, 128
          %s1189 = scalar_lea.hbm %s5, %s1188
          %s1191 = sshll.u32 1, 14
          %s1192 = sxor.u32 4294967295, %s1191
          %s1195 = sshll.u32 7, 18
          %s1196 = sxor.u32 4294967295, %s1195
          %s1197 = sand.u32 0, %s1196
          %s1199 = sor.u32 %s1197, 0
          %s1200 = sshll.u32 %s1180, 4
          %s1201 = int_to_ptr.vmem [resolvable:$true] %s1200
          %1207 = sst [smem:[#allocation15]] 1024
          %s1208 = scalar_lea.smem [#allocation15], 1
          %1209 = sst [smem:[%s1208]] 2048
          %s1210 = scalar_lea.smem [#allocation15], 2
          %1211 = sst [smem:[%s1210]] 8
          %s1212 = scalar_lea.smem [#allocation15], 3
          %1213 = sst [smem:[%s1212]] 128
          %s1214 = scalar_lea.smem [#allocation15], 4
          %1215 = sst [smem:[%s1214]] 128
          %s1216 = scalar_lea.smem [#allocation15], 5
          %1217 = sst [smem:[%s1216]] 8
          %1219 = dma.general %s1201, 3072, %s1189, %s1177, 131072, [#allocation15], %s1199, 0
        $region64: #{tpu_custom_call.1} parent=39 // pred_fallthru
          _
      $region40: #{tpu_custom_call.1} parent=5 // pred_fallthru
        _
      %p1220 = scmp.le.s32.totalorder 2, %s23
      // Predicated region
      $region65: #{tpu_custom_call.1} parent=5 // pred_check
        %p1221 = pneg %p1220
      $region66: #{tpu_custom_call.1} parent=5 // pred_check_branch
        %1223 = sbr.rel (%p1221) target = $region68
      $region67: #{tpu_custom_call.1} parent=5 // pred_region
        %s1224 = ssub.s32 %s23, 2
        // Predicated region
        $region69: #{tpu_custom_call.1} parent=67 // pred_check
          %p1225 = pneg %p182
        $region70: #{tpu_custom_call.1} parent=67 // pred_check_branch
          %1227 = sbr.rel (%p1225) target = $region72
        $region71: #{tpu_custom_call.1} parent=67 // pred_region
          %s1228 = sand.u32 %s167, 1
          %s1229 = scalar_lea.sflag [#allocation4], %s1228
          %s1230 = sand.u32 %s167, 1
          %s1231 = smul.addr %s1230, 192
          %s1232 = scalar_lea.vmem [#allocation11], %s1231
          %1233 = dma.done %s1229, 3072
        $region72: #{tpu_custom_call.1} parent=67 // pred_fallthru
          _
      $region68: #{tpu_custom_call.1} parent=5 // pred_fallthru
        _
    $region6: #{tpu_custom_call.1} parent=1 // loop_footer
      %s27 = sadd.s32 1, %s23
    $region7: #{tpu_custom_call.1} parent=1 // loop_footer_branch
      %22 = sbr.rel target = $region3
    $region8: #{tpu_custom_call.1} parent=1 // loop_exit
      _
    %1234 = vsyncpa [#allocation3], 1
    %s1235 = scalar_lea.sflag [#allocation3], 1
    %1236 = vsyncpa %s1235, 1
    %1237 = vsyncpa [#allocation6], 1
    %s1238 = scalar_lea.sflag [#allocation6], 1
    %1239 = vsyncpa %s1238, 1
    %1240 = vsyncpa [#allocation9], 1
    %s1241 = scalar_lea.sflag [#allocation9], 1
    %1242 = vsyncpa %s1241, 1
    %1243 = vsyncpa [#allocation4], 1
    %s1244 = scalar_lea.sflag [#allocation4], 1
    %1245 = vsyncpa %s1244, 1

</llo_original>
